<compile_context>
chip_gen: v7x
topology: tpu7x:2x2x1
jax: 0.10.0
libtpu: 0.0.40
codegen_flags: <defaults>
</compile_context>

<pallas_src>
import numpy as np
import jax
import jax.numpy as jnp
from jax.experimental import pallas as pl
from jax.experimental.pallas import tpu as pltpu

# ---- model constants (MLP(num_classes=2, c1=False)) ----
N_INPUTS = 14
NUM_CLASSES = 2
LAYER_DIMS = (N_INPUTS, 36, 128, 80, 50, 10, NUM_CLASSES)
NUM_LAYERS = 6
LANES = 128            # lane-pad the param slab and the logits to one vreg width


def _round_up(x, m):
    return (x + m - 1) // m * m


def _make_layout():
    """Static row layout of the packed parameter slab.

    Per layer l we reserve:
      * round_up(fan_in, 8) rows for W_l (stored in columns [0, fan_out))
      * 8 rows for b_l                   (columns [0, fan_out))
    so every kernel slice starts on an 8-sublane boundary and on lane 0.
    """
    layout = []
    row = 0
    for l in range(NUM_LAYERS):
        fi, fo = LAYER_DIMS[l], LAYER_DIMS[l + 1]
        w_row = row
        row += _round_up(fi, 8)
        b_row = row
        row += 8
        layout.append((w_row, b_row, fi, fo))
    return tuple(layout), row


LAYOUT, SLAB_ROWS = _make_layout()        # SLAB_ROWS == 384


def pack_params(params):
    """Pack (w1, b1, ..., w6, b6) into one zero-padded [SLAB_ROWS, 128] f32 slab."""
    slab = np.zeros((SLAB_ROWS, LANES), np.float32)
    for l, (w_row, b_row, fi, fo) in enumerate(LAYOUT):
        w = np.asarray(params[2 * l], np.float32).reshape(fi, fo)
        b = np.asarray(params[2 * l + 1], np.float32).reshape(fo)
        slab[w_row:w_row + fi, :fo] = w
        slab[b_row, :fo] = b
    return jnp.asarray(slab)


# ----------------------------------------------------------------------------------------
# Pallas kernel: whole 6-layer forward for one batch tile
# ----------------------------------------------------------------------------------------
def mlp_kernel(x_ref, slab_ref, out_ref):
    h = x_ref[...]                                      # [tm, 14]
    for l, (w_row, b_row, fi, fo) in enumerate(LAYOUT):
        last = (l == NUM_LAYERS - 1)
        # Final layer keeps all 128 (zero-padded) lanes -> one unmasked
        # lane-dense store; earlier layers use the exact fan_out.
        cols = LANES if last else fo
        w = slab_ref[w_row:w_row + fi, 0:cols]          # static 8/128-aligned slice
        b = slab_ref[b_row:b_row + 1, 0:cols]
        h = jnp.dot(h, w, preferred_element_type=jnp.float32) + b
        if not last:
            h = jnp.maximum(h, 0.0)                     # ReLU (fc6 has none)
    out_ref[...] = h                                    # [tm, 128]; cols >= 2 are zero


def mlp_forward(x, slab, *, tm=None):
    """x: [B, 14] f32, slab: packed params -> [B, NUM_CLASSES] f32 logits."""
    B = x.shape[0]
    # Overhead-bound kernel: use the whole batch as a single tile by default
    # (cap per-step rows so very large batches still tile comfortably).
    if tm is None:
        tm = min(_round_up(B, 8), 4096)
    B_pad = _round_up(B, tm)
    if B_pad != B:
        x = jnp.pad(x, ((0, B_pad - B), (0, 0)))
    grid = (B_pad // tm,)

    layer_flops = sum(fi * fo for (_, _, fi, fo) in LAYOUT)
    cost = pl.CostEstimate(
        flops=2 * B_pad * layer_flops,
        transcendentals=0,
        bytes_accessed=(B_pad * N_INPUTS + SLAB_ROWS * LANES + B_pad * LANES) * 4,
    )

    out = pl.pallas_call(
        mlp_kernel,
        out_shape=jax.ShapeDtypeStruct((B_pad, LANES), jnp.float32),
        grid=grid,
        in_specs=[
            pl.BlockSpec((tm, N_INPUTS), lambda i: (i, 0)),       # batch tile
            pl.BlockSpec((SLAB_ROWS, LANES), lambda i: (0, 0)),   # params: one resident slab
        ],
        out_specs=pl.BlockSpec((tm, LANES), lambda i: (i, 0)),    # lane-dense store
        compiler_params=pltpu.CompilerParams(
            # Single (or few) step(s); don't split a ~µs kernel across TensorCores.
            dimension_semantics=("arbitrary",),
        ),
        cost_estimate=cost,
    )(x, slab)
    return out[:B, :NUM_CLASSES]


# ----------------------------------------------------------------------------------------
# Pure-JAX reference (same math, no Pallas) for a sanity check
# ----------------------------------------------------------------------------------------
def ref_forward(x, params):
    h = x
    for l in range(NUM_LAYERS):
        w, b = params[2 * l], params[2 * l + 1]
        h = h @ w + b
        if l < NUM_LAYERS - 1:
            h = jnp.maximum(h, 0.0)
    return h


# ----------------------------------------------------------------------------------------
if __name__ == "__main__":
    key = jax.random.PRNGKey(0)
    ks = jax.random.split(key, 13)

    BATCH = 256
    x = jax.random.normal(ks[0], (BATCH, N_INPUTS), jnp.float32)

    def init_linear(kw, kb, fan_in, fan_out, scale):
        w = jax.random.normal(kw, (fan_in, fan_out), jnp.float32) * scale
        b = jax.random.normal(kb, (1, fan_out), jnp.float32) * 0.05
        return w, b

    scales = (0.25, 0.15, 0.10, 0.12, 0.15, 0.30)
    params = []
    for l in range(NUM_LAYERS):
        w, b = init_linear(ks[1 + 2 * l], ks[2 + 2 * l],
                           LAYER_DIMS[l], LAYER_DIMS[l + 1], scales[l])
        params += [w, b]
    params = tuple(params)

    slab = pack_params(params)

    out = jax.block_until_ready(mlp_forward(x, slab))

    ref = ref_forward(x, params)
    assert out.shape == (BATCH, NUM_CLASSES)
    assert bool(jnp.all(jnp.isfinite(out)))
    np.testing.assert_allclose(np.asarray(out), np.asarray(ref), rtol=1e-4, atol=1e-4)

    print("KERNEL_OK")
</pallas_src>

<mosaic_0001>
module attributes {stable_mosaic.version = 11 : i64} {
  func.func @mlp_kernel(%arg0: i32, %arg1: memref<256x14xf32, #tpu.memory_space<vmem>>, %arg2: memref<384x128xf32, #tpu.memory_space<vmem>>, %arg3: memref<256x128xf32, #tpu.memory_space<vmem>>) attributes {dimension_semantics = [#tpu.dimension_semantics<arbitrary>], iteration_bounds = array<i64: 1>, scalar_prefetch = 0 : i64, scratch_operands = 0 : i64, tpu.core_type = #tpu.core_type<tc>, window_params = [{transform_indices = @transform_0, window_bounds = array<i64: 256, 14>}, {pipeline_mode = #tpu.pipeline_mode<synchronous>, transform_indices = @transform_1, window_bounds = array<i64: 384, 128>}, {transform_indices = @transform_2, window_bounds = array<i64: 256, 128>}]} {
    %c0 = arith.constant 0 : index
    %c0_0 = arith.constant 0 : index
    %0 = vector.load %arg1[%c0, %c0_0] : memref<256x14xf32, #tpu.memory_space<vmem>>, vector<256x14xf32>
    %c0_1 = arith.constant 0 : index
    %c0_2 = arith.constant 0 : index
    %1 = vector.load %arg2[%c0_1, %c0_2] : memref<384x128xf32, #tpu.memory_space<vmem>>, vector<14x36xf32>
    %c16 = arith.constant 16 : index
    %c0_3 = arith.constant 0 : index
    %2 = vector.load %arg2[%c16, %c0_3] : memref<384x128xf32, #tpu.memory_space<vmem>>, vector<1x36xf32>
    %cst = arith.constant dense<0.000000e+00> : vector<256x36xf32>
    %3 = tpu.matmul %0, %1, %cst {dimension_numbers = #tpu.dot_dimension_numbers<[1], [0], [0], [1], [0, 0, 1, 1], [], []>} : vector<256x14xf32>, vector<14x36xf32>, vector<256x36xf32> -> vector<256x36xf32>
    %4 = vector.broadcast %2 : vector<1x36xf32> to vector<256x36xf32>
    %5 = arith.addf %3, %4 : vector<256x36xf32>
    %cst_4 = arith.constant 0.000000e+00 : f32
    %6 = vector.broadcast %cst_4 : f32 to vector<256x36xf32>
    %7 = arith.maximumf %5, %6 : vector<256x36xf32>
    %c24 = arith.constant 24 : index
    %c0_5 = arith.constant 0 : index
    %8 = vector.load %arg2[%c24, %c0_5] : memref<384x128xf32, #tpu.memory_space<vmem>>, vector<36x128xf32>
    %c64 = arith.constant 64 : index
    %c0_6 = arith.constant 0 : index
    %9 = vector.load %arg2[%c64, %c0_6] : memref<384x128xf32, #tpu.memory_space<vmem>>, vector<1x128xf32>
    %cst_7 = arith.constant dense<0.000000e+00> : vector<256x128xf32>
    %10 = tpu.matmul %7, %8, %cst_7 {dimension_numbers = #tpu.dot_dimension_numbers<[1], [0], [0], [1], [0, 0, 1, 1], [], []>} : vector<256x36xf32>, vector<36x128xf32>, vector<256x128xf32> -> vector<256x128xf32>
    %11 = vector.broadcast %9 : vector<1x128xf32> to vector<256x128xf32>
    %12 = arith.addf %10, %11 : vector<256x128xf32>
    %cst_8 = arith.constant 0.000000e+00 : f32
    %13 = vector.broadcast %cst_8 : f32 to vector<256x128xf32>
    %14 = arith.maximumf %12, %13 : vector<256x128xf32>
    %c72 = arith.constant 72 : index
    %c0_9 = arith.constant 0 : index
    %15 = vector.load %arg2[%c72, %c0_9] : memref<384x128xf32, #tpu.memory_space<vmem>>, vector<128x80xf32>
    %c200 = arith.constant 200 : index
    %c0_10 = arith.constant 0 : index
    %16 = vector.load %arg2[%c200, %c0_10] : memref<384x128xf32, #tpu.memory_space<vmem>>, vector<1x80xf32>
    %cst_11 = arith.constant dense<0.000000e+00> : vector<256x80xf32>
    %17 = tpu.matmul %14, %15, %cst_11 {dimension_numbers = #tpu.dot_dimension_numbers<[1], [0], [0], [1], [0, 0, 1, 1], [], []>} : vector<256x128xf32>, vector<128x80xf32>, vector<256x80xf32> -> vector<256x80xf32>
    %18 = vector.broadcast %16 : vector<1x80xf32> to vector<256x80xf32>
    %19 = arith.addf %17, %18 : vector<256x80xf32>
    %cst_12 = arith.constant 0.000000e+00 : f32
    %20 = vector.broadcast %cst_12 : f32 to vector<256x80xf32>
    %21 = arith.maximumf %19, %20 : vector<256x80xf32>
    %c208 = arith.constant 208 : index
    %c0_13 = arith.constant 0 : index
    %22 = vector.load %arg2[%c208, %c0_13] : memref<384x128xf32, #tpu.memory_space<vmem>>, vector<80x50xf32>
    %c288 = arith.constant 288 : index
    %c0_14 = arith.constant 0 : index
    %23 = vector.load %arg2[%c288, %c0_14] : memref<384x128xf32, #tpu.memory_space<vmem>>, vector<1x50xf32>
    %cst_15 = arith.constant dense<0.000000e+00> : vector<256x50xf32>
    %24 = tpu.matmul %21, %22, %cst_15 {dimension_numbers = #tpu.dot_dimension_numbers<[1], [0], [0], [1], [0, 0, 1, 1], [], []>} : vector<256x80xf32>, vector<80x50xf32>, vector<256x50xf32> -> vector<256x50xf32>
    %25 = vector.broadcast %23 : vector<1x50xf32> to vector<256x50xf32>
    %26 = arith.addf %24, %25 : vector<256x50xf32>
    %cst_16 = arith.constant 0.000000e+00 : f32
    %27 = vector.broadcast %cst_16 : f32 to vector<256x50xf32>
    %28 = arith.maximumf %26, %27 : vector<256x50xf32>
    %c296 = arith.constant 296 : index
    %c0_17 = arith.constant 0 : index
    %29 = vector.load %arg2[%c296, %c0_17] : memref<384x128xf32, #tpu.memory_space<vmem>>, vector<50x10xf32>
    %c352 = arith.constant 352 : index
    %c0_18 = arith.constant 0 : index
    %30 = vector.load %arg2[%c352, %c0_18] : memref<384x128xf32, #tpu.memory_space<vmem>>, vector<1x10xf32>
    %cst_19 = arith.constant dense<0.000000e+00> : vector<256x10xf32>
    %31 = tpu.matmul %28, %29, %cst_19 {dimension_numbers = #tpu.dot_dimension_numbers<[1], [0], [0], [1], [0, 0, 1, 1], [], []>} : vector<256x50xf32>, vector<50x10xf32>, vector<256x10xf32> -> vector<256x10xf32>
    %32 = vector.broadcast %30 : vector<1x10xf32> to vector<256x10xf32>
    %33 = arith.addf %31, %32 : vector<256x10xf32>
    %cst_20 = arith.constant 0.000000e+00 : f32
    %34 = vector.broadcast %cst_20 : f32 to vector<256x10xf32>
    %35 = arith.maximumf %33, %34 : vector<256x10xf32>
    %c360 = arith.constant 360 : index
    %c0_21 = arith.constant 0 : index
    %36 = vector.load %arg2[%c360, %c0_21] : memref<384x128xf32, #tpu.memory_space<vmem>>, vector<10x128xf32>
    %c376 = arith.constant 376 : index
    %c0_22 = arith.constant 0 : index
    %37 = vector.load %arg2[%c376, %c0_22] : memref<384x128xf32, #tpu.memory_space<vmem>>, vector<1x128xf32>
    %cst_23 = arith.constant dense<0.000000e+00> : vector<256x128xf32>
    %38 = tpu.matmul %35, %36, %cst_23 {dimension_numbers = #tpu.dot_dimension_numbers<[1], [0], [0], [1], [0, 0, 1, 1], [], []>} : vector<256x10xf32>, vector<10x128xf32>, vector<256x128xf32> -> vector<256x128xf32>
    %39 = vector.broadcast %37 : vector<1x128xf32> to vector<256x128xf32>
    %40 = arith.addf %38, %39 : vector<256x128xf32>
    %c0_24 = arith.constant 0 : index
    %c0_25 = arith.constant 0 : index
    %41 = vector.load %arg3[%c0_24, %c0_25] : memref<256x128xf32, #tpu.memory_space<vmem>>, vector<256x128xf32>
    tpu.vector_store %arg3[%c0_24, %c0_25], %40 {strides = array<i32>} : memref<256x128xf32, #tpu.memory_space<vmem>>, vector<256x128xf32>,
    return
  }
  func.func @transform_0(%arg0: i32) -> (i32, i32) {
    %c0_i32 = arith.constant 0 : i32
    %c0_i32_0 = arith.constant 0 : i32
    return %arg0, %c0_i32 : i32, i32
  }
  func.func @transform_1(%arg0: i32) -> (i32, i32) {
    %c0_i32 = arith.constant 0 : i32
    %c0_i32_0 = arith.constant 0 : i32
    %c0_i32_1 = arith.constant 0 : i32
    return %c0_i32, %c0_i32_0 : i32, i32
  }
  func.func @transform_2(%arg0: i32) -> (i32, i32) {
    %c0_i32 = arith.constant 0 : i32
    %c0_i32_0 = arith.constant 0 : i32
    return %arg0, %c0_i32 : i32, i32
  }
}

</mosaic_0001>

<llo_original>
// kernel: tpu_custom_call.1
$region0: #{tpu_custom_call.1}
  #allocation0 [shape = 'u32[]', space=smem, size = 0x4, offset = 0x4, fixed_abs, tag = 'smem constant byte address 0x4 - core index']
  #allocation1 [shape = 'u32[144,128]{1,0:T(1,128)}', space=vmem, size = 0x12000, scoped, tag = 'internal scratch']
  %s0 = inlined_call_operand.vmem [shape: f32[256,14], index: 0, kind: input, shape index: {}]
  %s1 = inlined_call_operand.hbm [shape: f32[384,128], index: 1, kind: input, shape index: {}]
  %s2 = inlined_call_operand.hbm [shape: f32[256,128], index: 2, kind: output, shape index: {}]
  %s3 = sld [smem:[#allocation0]]
  $region22: #{tpu_custom_call.1} parent=0
    _
  %s5 = ssub.s32 1, %s3
  %s6 = scalar_select 0, %s5, %s3
  $region1: #{tpu_custom_call.1} parent=0
    #allocation2 [shape = 'u8[196608]{0}', space=vmem, size = 0x30000, scoped, tag = 'input window, operand 1, single buffered']
    #allocation3 [shape = 's32[1]{0}', space=sflag, size = 0x4, scoped, tag = 'scoped memory for tpu_custom_call.1']
    #allocation4 [shape = 's32[1]{0}', space=sflag, size = 0x4, scoped, tag = 'scoped memory for tpu_custom_call.1']
    #allocation5 [shape = 'u8[131072]{0}', space=vmem, size = 0x20000, scoped, tag = 'output window, operand 0, single buffered']
    %7 = vsyncpa [#allocation3], 0
    %8 = vsyncpa [#allocation4], 0
    // Predicated region
    $region2: #{tpu_custom_call.1} parent=1 // pred_check
      _
    $region3: #{tpu_custom_call.1} parent=1 // pred_check_branch
      %10 = sbr.rel (0) target = $region5
    $region4: #{tpu_custom_call.1} parent=1 // pred_region
      _
    $region5: #{tpu_custom_call.1} parent=1 // pred_fallthru
      _
    // Predicated region
    $region6: #{tpu_custom_call.1} parent=1 // pred_check
      _
    $region7: #{tpu_custom_call.1} parent=1 // pred_check_branch
      %12 = sbr.rel (0) target = $region9
    $region8: #{tpu_custom_call.1} parent=1 // pred_region
      %s14 = ssub.s32 6144, 6144
      %15 = vsyncadd [#allocation3], %s14
      %s16 = sshll.u32 [#allocation2], 4
      %s17 = int_to_ptr.vmem [resolvable:$true] %s16
      %22 = dma.hbm_to_vmem [thread:$0]  %s1, 6144, %s17, [#allocation3], 128, 128, 8
    $region9: #{tpu_custom_call.1} parent=1 // pred_fallthru
      _
    // Predicated region
    $region10: #{tpu_custom_call.1} parent=1 // pred_check
      _
    $region11: #{tpu_custom_call.1} parent=1 // pred_check_branch
      %24 = sbr.rel (0) target = $region13
    $region12: #{tpu_custom_call.1} parent=1 // pred_region
      %25 = dma.done [#allocation3], 6144
    $region13: #{tpu_custom_call.1} parent=1 // pred_fallthru
      _
    %v26 = vld [vmem:[%s0] sm:$0xff]
    %v27 = vld [vmem:[%s0 + $0x8] sm:$0xff]
    %v28 = vld [vmem:[%s0 + $0x10] sm:$0xff]
    %v29 = vld [vmem:[%s0 + $0x18] sm:$0xff]
    %v30 = vld [vmem:[%s0 + $0x20] sm:$0xff]
    %v31 = vld [vmem:[%s0 + $0x28] sm:$0xff]
    %v32 = vld [vmem:[%s0 + $0x30] sm:$0xff]
    %v33 = vld [vmem:[%s0 + $0x38] sm:$0xff]
    %v34 = vld [vmem:[%s0 + $0x40] sm:$0xff]
    %v35 = vld [vmem:[%s0 + $0x48] sm:$0xff]
    %v36 = vld [vmem:[%s0 + $0x50] sm:$0xff]
    %v37 = vld [vmem:[%s0 + $0x58] sm:$0xff]
    %v38 = vld [vmem:[%s0 + $0x60] sm:$0xff]
    %v39 = vld [vmem:[%s0 + $0x68] sm:$0xff]
    %v40 = vld [vmem:[%s0 + $0x70] sm:$0xff]
    %v41 = vld [vmem:[%s0 + $0x78] sm:$0xff]
    %v42 = vld [vmem:[%s0 + $0x80] sm:$0xff]
    %v43 = vld [vmem:[%s0 + $0x88] sm:$0xff]
    %v44 = vld [vmem:[%s0 + $0x90] sm:$0xff]
    %v45 = vld [vmem:[%s0 + $0x98] sm:$0xff]
    %v46 = vld [vmem:[%s0 + $0xa0] sm:$0xff]
    %v47 = vld [vmem:[%s0 + $0xa8] sm:$0xff]
    %v48 = vld [vmem:[%s0 + $0xb0] sm:$0xff]
    %v49 = vld [vmem:[%s0 + $0xb8] sm:$0xff]
    %v50 = vld [vmem:[%s0 + $0xc0] sm:$0xff]
    %v51 = vld [vmem:[%s0 + $0xc8] sm:$0xff]
    %v52 = vld [vmem:[%s0 + $0xd0] sm:$0xff]
    %v53 = vld [vmem:[%s0 + $0xd8] sm:$0xff]
    %v54 = vld [vmem:[%s0 + $0xe0] sm:$0xff]
    %v55 = vld [vmem:[%s0 + $0xe8] sm:$0xff]
    %v56 = vld [vmem:[%s0 + $0xf0] sm:$0xff]
    %v57 = vld [vmem:[%s0 + $0xf8] sm:$0xff]
    %v58 = vld [vmem:[#allocation2] sm:$0xff]
    %v59 = vld [vmem:[#allocation2 + $0x8] sm:$0x3f]
    %v60 = vld [vmem:[#allocation2 + $0x10] sm:$0x1]
    %v61 = vlaneseq
    %v62 = vshrl.u32 %v61, 7
    %v63 = vsub.s32 0, %v62
    %v64 = vrot.slane %v60, %v63
    %vm65 = vcmask 113664
    %v67 = vsel %vm65, %v26, 0
    %v70 = vsel %vm65, %v27, 0
    %v73 = vsel %vm65, %v28, 0
    %v76 = vsel %vm65, %v29, 0
    %v79 = vsel %vm65, %v30, 0
    %v82 = vsel %vm65, %v31, 0
    %v85 = vsel %vm65, %v32, 0
    %v88 = vsel %vm65, %v33, 0
    %v91 = vsel %vm65, %v34, 0
    %v94 = vsel %vm65, %v35, 0
    %v97 = vsel %vm65, %v36, 0
    %v100 = vsel %vm65, %v37, 0
    %v103 = vsel %vm65, %v38, 0
    %v106 = vsel %vm65, %v39, 0
    %v109 = vsel %vm65, %v40, 0
    %v112 = vsel %vm65, %v41, 0
    %v115 = vsel %vm65, %v42, 0
    %v118 = vsel %vm65, %v43, 0
    %v121 = vsel %vm65, %v44, 0
    %v124 = vsel %vm65, %v45, 0
    %v127 = vsel %vm65, %v46, 0
    %v130 = vsel %vm65, %v47, 0
    %v133 = vsel %vm65, %v48, 0
    %v136 = vsel %vm65, %v49, 0
    %v139 = vsel %vm65, %v50, 0
    %v142 = vsel %vm65, %v51, 0
    %v145 = vsel %vm65, %v52, 0
    %v148 = vsel %vm65, %v53, 0
    %v151 = vsel %vm65, %v54, 0
    %v154 = vsel %vm65, %v55, 0
    %v157 = vsel %vm65, %v56, 0
    %v160 = vsel %vm65, %v57, 0
    %vm162 = vcmask 1045504
    %v164 = vsel %vm162, %v59, 0
    %166 = vmatprep.subr.mxu0 0.0
    %167 = vmatpush1.msra.mxu0 %v58
    %168 = vmatprep.subr.mxu0 0.0
    %169 = vmatpush1.msra.mxu0 %v164
    %170 = vmatprep.subr.mxu0 0.0
    %171 = vmatpush1.msra.mxu0 0.0
    %172 = vmatprep.subr.mxu0 0.0
    %173 = vmatpush1.msra.mxu0 0.0
    %174 = vmatprep.subr.mxu0 0.0
    %175 = vmatpush1.msra.mxu0 0.0
    %176 = vmatprep.subr.mxu0 0.0
    %177 = vmatpush1.msra.mxu0 0.0
    %178 = vmatprep.subr.mxu0 0.0
    %179 = vmatpush1.msra.mxu0 0.0
    %180 = vmatprep.subr.mxu0 0.0
    %181 = vmatpush1.msra.mxu0 0.0
    %182 = vmatprep.subr.mxu0 0.0
    %183 = vmatpush1.msra.mxu0 0.0
    %184 = vmatprep.subr.mxu0 0.0
    %185 = vmatpush1.msra.mxu0 0.0
    %186 = vmatprep.subr.mxu0 0.0
    %187 = vmatpush1.msra.mxu0 0.0
    %188 = vmatprep.subr.mxu0 0.0
    %189 = vmatpush1.msra.mxu0 0.0
    %190 = vmatprep.subr.mxu0 0.0
    %191 = vmatpush1.msra.mxu0 0.0
    %192 = vmatprep.subr.mxu0 0.0
    %193 = vmatpush1.msra.mxu0 0.0
    %194 = vmatprep.subr.mxu0 0.0
    %195 = vmatpush1.msra.mxu0 0.0
    %196 = vmatprep.subr.mxu0 0.0
    %197 = vmatpush1.msra.mxu0 0.0
    %198 = vmatprep.subr.mxu0 0.0
    %199 = vmatpush1.msra.mxu0 0.0
    %200 = vmatprep.subr.mxu0 0.0
    %201 = vmatpush1.msra.mxu0 0.0
    %202 = vmatprep.subr.mxu0 0.0
    %203 = vmatpush1.msra.mxu0 0.0
    %204 = vmatprep.subr.mxu0 0.0
    %205 = vmatpush1.msra.mxu0 0.0
    %206 = vmatprep.subr.mxu0 0.0
    %207 = vmatpush1.msra.mxu0 0.0
    %208 = vmatprep.subr.mxu0 0.0
    %209 = vmatpush1.msra.mxu0 0.0
    %210 = vmatprep.subr.mxu0 0.0
    %211 = vmatpush1.msra.mxu0 0.0
    %212 = vmatprep.subr.mxu0 0.0
    %213 = vmatpush1.msra.mxu0 0.0
    %214 = vmatprep.subr.mxu0 0.0
    %215 = vmatpush1.msra.mxu0 0.0
    %216 = vmatprep.subr.mxu0 0.0
    %217 = vmatpush1.msra.mxu0 0.0
    %218 = vmatprep.subr.mxu0 0.0
    %219 = vmatpush1.msra.mxu0 0.0
    %220 = vmatprep.subr.mxu0 0.0
    %221 = vmatpush1.msra.mxu0 0.0
    %222 = vmatprep.subr.mxu0 0.0
    %223 = vmatpush1.msra.mxu0 0.0
    %224 = vmatprep.subr.mxu0 0.0
    %225 = vmatpush1.msra.mxu0 0.0
    %226 = vmatprep.subr.mxu0 0.0
    %227 = vmatpush1.msra.mxu0 0.0
    %228 = vmatprep.subr.mxu0 0.0
    %229 = vmatpush1.msra.mxu0 0.0
    %230 = vmatprep.mubr.f32.mxu0 0.0
    %231 = vmatmul.mubr.f32.gmra.mrb[0].mxu0 %v67
    %v232 = vpop.f32.mrb[0].mxu0
    %v233 = vadd.f32 %v64, %v232
    %v234 = vpop.f32.mrb[0].mxu0
    %235 = vmatprep.mubr.f32.mxu0 0.0
    %236 = vmatmul.mubr.f32.gmra.mrb[0].mxu0 %v70
    %v237 = vpop.f32.mrb[0].mxu0
    %v238 = vadd.f32 %v64, %v237
    %v239 = vpop.f32.mrb[0].mxu0
    %240 = vmatprep.mubr.f32.mxu0 0.0
    %241 = vmatmul.mubr.f32.gmra.mrb[0].mxu0 %v73
    %v242 = vpop.f32.mrb[0].mxu0
    %v243 = vadd.f32 %v64, %v242
    %v244 = vpop.f32.mrb[0].mxu0
    %245 = vmatprep.mubr.f32.mxu0 0.0
    %246 = vmatmul.mubr.f32.gmra.mrb[0].mxu0 %v76
    %v247 = vpop.f32.mrb[0].mxu0
    %v248 = vadd.f32 %v64, %v247
    %v249 = vpop.f32.mrb[0].mxu0
    %250 = vmatprep.mubr.f32.mxu0 0.0
    %251 = vmatmul.mubr.f32.gmra.mrb[0].mxu0 %v79
    %v252 = vpop.f32.mrb[0].mxu0
    %v253 = vadd.f32 %v64, %v252
    %v254 = vpop.f32.mrb[0].mxu0
    %255 = vmatprep.mubr.f32.mxu0 0.0
    %256 = vmatmul.mubr.f32.gmra.mrb[0].mxu0 %v82
    %v257 = vpop.f32.mrb[0].mxu0
    %v258 = vadd.f32 %v64, %v257
    %v259 = vpop.f32.mrb[0].mxu0
    %260 = vmatprep.mubr.f32.mxu0 0.0
    %261 = vmatmul.mubr.f32.gmra.mrb[0].mxu0 %v85
    %v262 = vpop.f32.mrb[0].mxu0
    %v263 = vadd.f32 %v64, %v262
    %v264 = vpop.f32.mrb[0].mxu0
    %265 = vmatprep.mubr.f32.mxu0 0.0
    %266 = vmatmul.mubr.f32.gmra.mrb[0].mxu0 %v88
    %v267 = vpop.f32.mrb[0].mxu0
    %v268 = vadd.f32 %v64, %v267
    %v269 = vpop.f32.mrb[0].mxu0
    %270 = vmatprep.mubr.f32.mxu0 0.0
    %271 = vmatmul.mubr.f32.gmra.mrb[0].mxu0 %v91
    %v272 = vpop.f32.mrb[0].mxu0
    %v273 = vadd.f32 %v64, %v272
    %v274 = vpop.f32.mrb[0].mxu0
    %275 = vmatprep.mubr.f32.mxu0 0.0
    %276 = vmatmul.mubr.f32.gmra.mrb[0].mxu0 %v94
    %v277 = vpop.f32.mrb[0].mxu0
    %v278 = vadd.f32 %v64, %v277
    %v279 = vpop.f32.mrb[0].mxu0
    %280 = vmatprep.mubr.f32.mxu0 0.0
    %281 = vmatmul.mubr.f32.gmra.mrb[0].mxu0 %v97
    %v282 = vpop.f32.mrb[0].mxu0
    %v283 = vadd.f32 %v64, %v282
    %v284 = vpop.f32.mrb[0].mxu0
    %285 = vmatprep.mubr.f32.mxu0 0.0
    %286 = vmatmul.mubr.f32.gmra.mrb[0].mxu0 %v100
    %v287 = vpop.f32.mrb[0].mxu0
    %v288 = vadd.f32 %v64, %v287
    %v289 = vpop.f32.mrb[0].mxu0
    %290 = vmatprep.mubr.f32.mxu0 0.0
    %291 = vmatmul.mubr.f32.gmra.mrb[0].mxu0 %v103
    %v292 = vpop.f32.mrb[0].mxu0
    %v293 = vadd.f32 %v64, %v292
    %v294 = vpop.f32.mrb[0].mxu0
    %295 = vmatprep.mubr.f32.mxu0 0.0
    %296 = vmatmul.mubr.f32.gmra.mrb[0].mxu0 %v106
    %v297 = vpop.f32.mrb[0].mxu0
    %v298 = vadd.f32 %v64, %v297
    %v299 = vpop.f32.mrb[0].mxu0
    %300 = vmatprep.mubr.f32.mxu0 0.0
    %301 = vmatmul.mubr.f32.gmra.mrb[0].mxu0 %v109
    %v302 = vpop.f32.mrb[0].mxu0
    %v303 = vadd.f32 %v64, %v302
    %v304 = vpop.f32.mrb[0].mxu0
    %305 = vmatprep.mubr.f32.mxu0 0.0
    %306 = vmatmul.mubr.f32.gmra.mrb[0].mxu0 %v112
    %v307 = vpop.f32.mrb[0].mxu0
    %v308 = vadd.f32 %v64, %v307
    %v309 = vpop.f32.mrb[0].mxu0
    %310 = vmatprep.mubr.f32.mxu0 0.0
    %311 = vmatmul.mubr.f32.gmra.mrb[0].mxu0 %v115
    %v312 = vpop.f32.mrb[0].mxu0
    %v313 = vadd.f32 %v64, %v312
    %v314 = vpop.f32.mrb[0].mxu0
    %315 = vmatprep.mubr.f32.mxu0 0.0
    %316 = vmatmul.mubr.f32.gmra.mrb[0].mxu0 %v118
    %v317 = vpop.f32.mrb[0].mxu0
    %v318 = vadd.f32 %v64, %v317
    %v319 = vpop.f32.mrb[0].mxu0
    %320 = vmatprep.mubr.f32.mxu0 0.0
    %321 = vmatmul.mubr.f32.gmra.mrb[0].mxu0 %v121
    %v322 = vpop.f32.mrb[0].mxu0
    %v323 = vadd.f32 %v64, %v322
    %v324 = vpop.f32.mrb[0].mxu0
    %325 = vmatprep.mubr.f32.mxu0 0.0
    %326 = vmatmul.mubr.f32.gmra.mrb[0].mxu0 %v124
    %v327 = vpop.f32.mrb[0].mxu0
    %v328 = vadd.f32 %v64, %v327
    %v329 = vpop.f32.mrb[0].mxu0
    %330 = vmatprep.mubr.f32.mxu0 0.0
    %331 = vmatmul.mubr.f32.gmra.mrb[0].mxu0 %v127
    %v332 = vpop.f32.mrb[0].mxu0
    %v333 = vadd.f32 %v64, %v332
    %v334 = vpop.f32.mrb[0].mxu0
    %335 = vmatprep.mubr.f32.mxu0 0.0
    %336 = vmatmul.mubr.f32.gmra.mrb[0].mxu0 %v130
    %v337 = vpop.f32.mrb[0].mxu0
    %v338 = vadd.f32 %v64, %v337
    %v339 = vpop.f32.mrb[0].mxu0
    %340 = vmatprep.mubr.f32.mxu0 0.0
    %341 = vmatmul.mubr.f32.gmra.mrb[0].mxu0 %v133
    %v342 = vpop.f32.mrb[0].mxu0
    %v343 = vadd.f32 %v64, %v342
    %v344 = vpop.f32.mrb[0].mxu0
    %345 = vmatprep.mubr.f32.mxu0 0.0
    %346 = vmatmul.mubr.f32.gmra.mrb[0].mxu0 %v136
    %v347 = vpop.f32.mrb[0].mxu0
    %v348 = vadd.f32 %v64, %v347
    %v349 = vpop.f32.mrb[0].mxu0
    %350 = vmatprep.mubr.f32.mxu0 0.0
    %351 = vmatmul.mubr.f32.gmra.mrb[0].mxu0 %v139
    %v352 = vpop.f32.mrb[0].mxu0
    %v353 = vadd.f32 %v64, %v352
    %v354 = vpop.f32.mrb[0].mxu0
    %355 = vmatprep.mubr.f32.mxu0 0.0
    %356 = vmatmul.mubr.f32.gmra.mrb[0].mxu0 %v142
    %v357 = vpop.f32.mrb[0].mxu0
    %v358 = vadd.f32 %v64, %v357
    %v359 = vpop.f32.mrb[0].mxu0
    %360 = vmatprep.mubr.f32.mxu0 0.0
    %361 = vmatmul.mubr.f32.gmra.mrb[0].mxu0 %v145
    %v362 = vpop.f32.mrb[0].mxu0
    %v363 = vadd.f32 %v64, %v362
    %v364 = vpop.f32.mrb[0].mxu0
    %365 = vmatprep.mubr.f32.mxu0 0.0
    %366 = vmatmul.mubr.f32.gmra.mrb[0].mxu0 %v148
    %v367 = vpop.f32.mrb[0].mxu0
    %v368 = vadd.f32 %v64, %v367
    %v369 = vpop.f32.mrb[0].mxu0
    %370 = vmatprep.mubr.f32.mxu0 0.0
    %371 = vmatmul.mubr.f32.gmra.mrb[0].mxu0 %v151
    %v372 = vpop.f32.mrb[0].mxu0
    %v373 = vadd.f32 %v64, %v372
    %v374 = vpop.f32.mrb[0].mxu0
    %375 = vmatprep.mubr.f32.mxu0 0.0
    %376 = vmatmul.mubr.f32.gmra.mrb[0].mxu0 %v154
    %v377 = vpop.f32.mrb[0].mxu0
    %v378 = vadd.f32 %v64, %v377
    %v379 = vpop.f32.mrb[0].mxu0
    %380 = vmatprep.mubr.f32.mxu0 0.0
    %381 = vmatmul.mubr.f32.gmra.mrb[0].mxu0 %v157
    %v382 = vpop.f32.mrb[0].mxu0
    %v383 = vadd.f32 %v64, %v382
    %v384 = vpop.f32.mrb[0].mxu0
    %385 = vmatprep.mubr.f32.mxu0 0.0
    %386 = vmatmul.mubr.f32.gmra.mrb[0].mxu0 %v160
    %v387 = vpop.f32.mrb[0].mxu0
    %v388 = vadd.f32 %v64, %v387
    %v389 = vpop.f32.mrb[0].mxu0
    %390 = vdwg.mxu0
    %v391 = vmax.f32 %v233, 0.0
    %v392 = vmax.f32 %v238, 0.0
    %v393 = vmax.f32 %v243, 0.0
    %v394 = vmax.f32 %v248, 0.0
    %v395 = vmax.f32 %v253, 0.0
    %v396 = vmax.f32 %v258, 0.0
    %v397 = vmax.f32 %v263, 0.0
    %v398 = vmax.f32 %v268, 0.0
    %v399 = vmax.f32 %v273, 0.0
    %v400 = vmax.f32 %v278, 0.0
    %v401 = vmax.f32 %v283, 0.0
    %v402 = vmax.f32 %v288, 0.0
    %v403 = vmax.f32 %v293, 0.0
    %v404 = vmax.f32 %v298, 0.0
    %v405 = vmax.f32 %v303, 0.0
    %v406 = vmax.f32 %v308, 0.0
    %v407 = vmax.f32 %v313, 0.0
    %v408 = vmax.f32 %v318, 0.0
    %v409 = vmax.f32 %v323, 0.0
    %v410 = vmax.f32 %v328, 0.0
    %v411 = vmax.f32 %v333, 0.0
    %v412 = vmax.f32 %v338, 0.0
    %v413 = vmax.f32 %v343, 0.0
    %v414 = vmax.f32 %v348, 0.0
    %v415 = vmax.f32 %v353, 0.0
    %v416 = vmax.f32 %v358, 0.0
    %v417 = vmax.f32 %v363, 0.0
    %v418 = vmax.f32 %v368, 0.0
    %v419 = vmax.f32 %v373, 0.0
    %v420 = vmax.f32 %v378, 0.0
    %v421 = vmax.f32 %v383, 0.0
    %v422 = vmax.f32 %v388, 0.0
    %v423 = vld [vmem:[#allocation2 + $0x18] sm:$0xff]
    %v424 = vld [vmem:[#allocation2 + $0x20] sm:$0xff]
    %v425 = vld [vmem:[#allocation2 + $0x28] sm:$0xff]
    %v426 = vld [vmem:[#allocation2 + $0x30] sm:$0xff]
    %v427 = vld [vmem:[#allocation2 + $0x38] sm:$0xf]
    %v428 = vld [vmem:[#allocation2 + $0x40] sm:$0x1]
    %v429 = vlaneseq
    %v430 = vshrl.u32 %v429, 7
    %v431 = vsub.s32 0, %v430
    %v432 = vrot.slane %v428, %v431
    %vm433 = vcmask 293888
    %v435 = vsel %vm433, %v391, 0
    %v438 = vsel %vm433, %v392, 0
    %v441 = vsel %vm433, %v393, 0
    %v444 = vsel %vm433, %v394, 0
    %v447 = vsel %vm433, %v395, 0
    %v450 = vsel %vm433, %v396, 0
    %v453 = vsel %vm433, %v397, 0
    %v456 = vsel %vm433, %v398, 0
    %v459 = vsel %vm433, %v399, 0
    %v462 = vsel %vm433, %v400, 0
    %v465 = vsel %vm433, %v401, 0
    %v468 = vsel %vm433, %v402, 0
    %v471 = vsel %vm433, %v403, 0
    %v474 = vsel %vm433, %v404, 0
    %v477 = vsel %vm433, %v405, 0
    %v480 = vsel %vm433, %v406, 0
    %v483 = vsel %vm433, %v407, 0
    %v486 = vsel %vm433, %v408, 0
    %v489 = vsel %vm433, %v409, 0
    %v492 = vsel %vm433, %v410, 0
    %v495 = vsel %vm433, %v411, 0
    %v498 = vsel %vm433, %v412, 0
    %v501 = vsel %vm433, %v413, 0
    %v504 = vsel %vm433, %v414, 0
    %v507 = vsel %vm433, %v415, 0
    %v510 = vsel %vm433, %v416, 0
    %v513 = vsel %vm433, %v417, 0
    %v516 = vsel %vm433, %v418, 0
    %v519 = vsel %vm433, %v419, 0
    %v522 = vsel %vm433, %v420, 0
    %v525 = vsel %vm433, %v421, 0
    %v528 = vsel %vm433, %v422, 0
    %vm530 = vcmask 1043456
    %v532 = vsel %vm530, %v427, 0
    %534 = vmatprep.subr.mxu0 0.0
    %535 = vmatpush1.msra.mxu0 %v423
    %536 = vmatprep.subr.mxu0 0.0
    %537 = vmatpush1.msra.mxu0 %v424
    %538 = vmatprep.subr.mxu0 0.0
    %539 = vmatpush1.msra.mxu0 %v425
    %540 = vmatprep.subr.mxu0 0.0
    %541 = vmatpush1.msra.mxu0 %v426
    %542 = vmatprep.subr.mxu0 0.0
    %543 = vmatpush1.msra.mxu0 %v532
    %544 = vmatprep.subr.mxu0 0.0
    %545 = vmatpush1.msra.mxu0 0.0
    %546 = vmatprep.subr.mxu0 0.0
    %547 = vmatpush1.msra.mxu0 0.0
    %548 = vmatprep.subr.mxu0 0.0
    %549 = vmatpush1.msra.mxu0 0.0
    %550 = vmatprep.subr.mxu0 0.0
    %551 = vmatpush1.msra.mxu0 0.0
    %552 = vmatprep.subr.mxu0 0.0
    %553 = vmatpush1.msra.mxu0 0.0
    %554 = vmatprep.subr.mxu0 0.0
    %555 = vmatpush1.msra.mxu0 0.0
    %556 = vmatprep.subr.mxu0 0.0
    %557 = vmatpush1.msra.mxu0 0.0
    %558 = vmatprep.subr.mxu0 0.0
    %559 = vmatpush1.msra.mxu0 0.0
    %560 = vmatprep.subr.mxu0 0.0
    %561 = vmatpush1.msra.mxu0 0.0
    %562 = vmatprep.subr.mxu0 0.0
    %563 = vmatpush1.msra.mxu0 0.0
    %564 = vmatprep.subr.mxu0 0.0
    %565 = vmatpush1.msra.mxu0 0.0
    %566 = vmatprep.subr.mxu0 0.0
    %567 = vmatpush1.msra.mxu0 0.0
    %568 = vmatprep.subr.mxu0 0.0
    %569 = vmatpush1.msra.mxu0 0.0
    %570 = vmatprep.subr.mxu0 0.0
    %571 = vmatpush1.msra.mxu0 0.0
    %572 = vmatprep.subr.mxu0 0.0
    %573 = vmatpush1.msra.mxu0 0.0
    %574 = vmatprep.subr.mxu0 0.0
    %575 = vmatpush1.msra.mxu0 0.0
    %576 = vmatprep.subr.mxu0 0.0
    %577 = vmatpush1.msra.mxu0 0.0
    %578 = vmatprep.subr.mxu0 0.0
    %579 = vmatpush1.msra.mxu0 0.0
    %580 = vmatprep.subr.mxu0 0.0
    %581 = vmatpush1.msra.mxu0 0.0
    %582 = vmatprep.subr.mxu0 0.0
    %583 = vmatpush1.msra.mxu0 0.0
    %584 = vmatprep.subr.mxu0 0.0
    %585 = vmatpush1.msra.mxu0 0.0
    %586 = vmatprep.subr.mxu0 0.0
    %587 = vmatpush1.msra.mxu0 0.0
    %588 = vmatprep.subr.mxu0 0.0
    %589 = vmatpush1.msra.mxu0 0.0
    %590 = vmatprep.subr.mxu0 0.0
    %591 = vmatpush1.msra.mxu0 0.0
    %592 = vmatprep.subr.mxu0 0.0
    %593 = vmatpush1.msra.mxu0 0.0
    %594 = vmatprep.subr.mxu0 0.0
    %595 = vmatpush1.msra.mxu0 0.0
    %596 = vmatprep.subr.mxu0 0.0
    %597 = vmatpush1.msra.mxu0 0.0
    %598 = vmatprep.mubr.f32.mxu0 0.0
    %599 = vmatmul.mubr.f32.gmra.mrb[0].mxu0 %v435
    %v600 = vpop.f32.mrb[0].mxu0
    %v601 = vadd.f32 %v432, %v600
    %v602 = vpop.f32.mrb[0].mxu0
    %603 = vmatprep.mubr.f32.mxu0 0.0
    %604 = vmatmul.mubr.f32.gmra.mrb[0].mxu0 %v438
    %v605 = vpop.f32.mrb[0].mxu0
    %v606 = vadd.f32 %v432, %v605
    %v607 = vpop.f32.mrb[0].mxu0
    %608 = vmatprep.mubr.f32.mxu0 0.0
    %609 = vmatmul.mubr.f32.gmra.mrb[0].mxu0 %v441
    %v610 = vpop.f32.mrb[0].mxu0
    %v611 = vadd.f32 %v432, %v610
    %v612 = vpop.f32.mrb[0].mxu0
    %613 = vmatprep.mubr.f32.mxu0 0.0
    %614 = vmatmul.mubr.f32.gmra.mrb[0].mxu0 %v444
    %v615 = vpop.f32.mrb[0].mxu0
    %v616 = vadd.f32 %v432, %v615
    %v617 = vpop.f32.mrb[0].mxu0
    %618 = vmatprep.mubr.f32.mxu0 0.0
    %619 = vmatmul.mubr.f32.gmra.mrb[0].mxu0 %v447
    %v620 = vpop.f32.mrb[0].mxu0
    %v621 = vadd.f32 %v432, %v620
    %v622 = vpop.f32.mrb[0].mxu0
    %623 = vmatprep.mubr.f32.mxu0 0.0
    %624 = vmatmul.mubr.f32.gmra.mrb[0].mxu0 %v450
    %v625 = vpop.f32.mrb[0].mxu0
    %v626 = vadd.f32 %v432, %v625
    %v627 = vpop.f32.mrb[0].mxu0
    %628 = vmatprep.mubr.f32.mxu0 0.0
    %629 = vmatmul.mubr.f32.gmra.mrb[0].mxu0 %v453
    %v630 = vpop.f32.mrb[0].mxu0
    %v631 = vadd.f32 %v432, %v630
    %v632 = vpop.f32.mrb[0].mxu0
    %633 = vmatprep.mubr.f32.mxu0 0.0
    %634 = vmatmul.mubr.f32.gmra.mrb[0].mxu0 %v456
    %v635 = vpop.f32.mrb[0].mxu0
    %v636 = vadd.f32 %v432, %v635
    %v637 = vpop.f32.mrb[0].mxu0
    %638 = vmatprep.mubr.f32.mxu0 0.0
    %639 = vmatmul.mubr.f32.gmra.mrb[0].mxu0 %v459
    %v640 = vpop.f32.mrb[0].mxu0
    %v641 = vadd.f32 %v432, %v640
    %v642 = vpop.f32.mrb[0].mxu0
    %643 = vmatprep.mubr.f32.mxu0 0.0
    %644 = vmatmul.mubr.f32.gmra.mrb[0].mxu0 %v462
    %v645 = vpop.f32.mrb[0].mxu0
    %v646 = vadd.f32 %v432, %v645
    %v647 = vpop.f32.mrb[0].mxu0
    %648 = vmatprep.mubr.f32.mxu0 0.0
    %649 = vmatmul.mubr.f32.gmra.mrb[0].mxu0 %v465
    %v650 = vpop.f32.mrb[0].mxu0
    %v651 = vadd.f32 %v432, %v650
    %v652 = vpop.f32.mrb[0].mxu0
    %653 = vmatprep.mubr.f32.mxu0 0.0
    %654 = vmatmul.mubr.f32.gmra.mrb[0].mxu0 %v468
    %v655 = vpop.f32.mrb[0].mxu0
    %v656 = vadd.f32 %v432, %v655
    %v657 = vpop.f32.mrb[0].mxu0
    %658 = vmatprep.mubr.f32.mxu0 0.0
    %659 = vmatmul.mubr.f32.gmra.mrb[0].mxu0 %v471
    %v660 = vpop.f32.mrb[0].mxu0
    %v661 = vadd.f32 %v432, %v660
    %v662 = vpop.f32.mrb[0].mxu0
    %663 = vmatprep.mubr.f32.mxu0 0.0
    %664 = vmatmul.mubr.f32.gmra.mrb[0].mxu0 %v474
    %v665 = vpop.f32.mrb[0].mxu0
    %v666 = vadd.f32 %v432, %v665
    %v667 = vpop.f32.mrb[0].mxu0
    %668 = vmatprep.mubr.f32.mxu0 0.0
    %669 = vmatmul.mubr.f32.gmra.mrb[0].mxu0 %v477
    %v670 = vpop.f32.mrb[0].mxu0
    %v671 = vadd.f32 %v432, %v670
    %v672 = vpop.f32.mrb[0].mxu0
    %673 = vmatprep.mubr.f32.mxu0 0.0
    %674 = vmatmul.mubr.f32.gmra.mrb[0].mxu0 %v480
    %v675 = vpop.f32.mrb[0].mxu0
    %v676 = vadd.f32 %v432, %v675
    %v677 = vpop.f32.mrb[0].mxu0
    %678 = vmatprep.mubr.f32.mxu0 0.0
    %679 = vmatmul.mubr.f32.gmra.mrb[0].mxu0 %v483
    %v680 = vpop.f32.mrb[0].mxu0
    %v681 = vadd.f32 %v432, %v680
    %v682 = vpop.f32.mrb[0].mxu0
    %683 = vmatprep.mubr.f32.mxu0 0.0
    %684 = vmatmul.mubr.f32.gmra.mrb[0].mxu0 %v486
    %v685 = vpop.f32.mrb[0].mxu0
    %v686 = vadd.f32 %v432, %v685
    %v687 = vpop.f32.mrb[0].mxu0
    %688 = vmatprep.mubr.f32.mxu0 0.0
    %689 = vmatmul.mubr.f32.gmra.mrb[0].mxu0 %v489
    %v690 = vpop.f32.mrb[0].mxu0
    %v691 = vadd.f32 %v432, %v690
    %v692 = vpop.f32.mrb[0].mxu0
    %693 = vmatprep.mubr.f32.mxu0 0.0
    %694 = vmatmul.mubr.f32.gmra.mrb[0].mxu0 %v492
    %v695 = vpop.f32.mrb[0].mxu0
    %v696 = vadd.f32 %v432, %v695
    %v697 = vpop.f32.mrb[0].mxu0
    %698 = vmatprep.mubr.f32.mxu0 0.0
    %699 = vmatmul.mubr.f32.gmra.mrb[0].mxu0 %v495
    %v700 = vpop.f32.mrb[0].mxu0
    %v701 = vadd.f32 %v432, %v700
    %v702 = vpop.f32.mrb[0].mxu0
    %703 = vmatprep.mubr.f32.mxu0 0.0
    %704 = vmatmul.mubr.f32.gmra.mrb[0].mxu0 %v498
    %v705 = vpop.f32.mrb[0].mxu0
    %v706 = vadd.f32 %v432, %v705
    %v707 = vpop.f32.mrb[0].mxu0
    %708 = vmatprep.mubr.f32.mxu0 0.0
    %709 = vmatmul.mubr.f32.gmra.mrb[0].mxu0 %v501
    %v710 = vpop.f32.mrb[0].mxu0
    %v711 = vadd.f32 %v432, %v710
    %v712 = vpop.f32.mrb[0].mxu0
    %713 = vmatprep.mubr.f32.mxu0 0.0
    %714 = vmatmul.mubr.f32.gmra.mrb[0].mxu0 %v504
    %v715 = vpop.f32.mrb[0].mxu0
    %v716 = vadd.f32 %v432, %v715
    %v717 = vpop.f32.mrb[0].mxu0
    %718 = vmatprep.mubr.f32.mxu0 0.0
    %719 = vmatmul.mubr.f32.gmra.mrb[0].mxu0 %v507
    %v720 = vpop.f32.mrb[0].mxu0
    %v721 = vadd.f32 %v432, %v720
    %v722 = vpop.f32.mrb[0].mxu0
    %723 = vmatprep.mubr.f32.mxu0 0.0
    %724 = vmatmul.mubr.f32.gmra.mrb[0].mxu0 %v510
    %v725 = vpop.f32.mrb[0].mxu0
    %v726 = vadd.f32 %v432, %v725
    %v727 = vpop.f32.mrb[0].mxu0
    %728 = vmatprep.mubr.f32.mxu0 0.0
    %729 = vmatmul.mubr.f32.gmra.mrb[0].mxu0 %v513
    %v730 = vpop.f32.mrb[0].mxu0
    %v731 = vadd.f32 %v432, %v730
    %v732 = vpop.f32.mrb[0].mxu0
    %733 = vmatprep.mubr.f32.mxu0 0.0
    %734 = vmatmul.mubr.f32.gmra.mrb[0].mxu0 %v516
    %v735 = vpop.f32.mrb[0].mxu0
    %v736 = vadd.f32 %v432, %v735
    %v737 = vpop.f32.mrb[0].mxu0
    %738 = vmatprep.mubr.f32.mxu0 0.0
    %739 = vmatmul.mubr.f32.gmra.mrb[0].mxu0 %v519
    %v740 = vpop.f32.mrb[0].mxu0
    %v741 = vadd.f32 %v432, %v740
    %v742 = vpop.f32.mrb[0].mxu0
    %743 = vmatprep.mubr.f32.mxu0 0.0
    %744 = vmatmul.mubr.f32.gmra.mrb[0].mxu0 %v522
    %v745 = vpop.f32.mrb[0].mxu0
    %v746 = vadd.f32 %v432, %v745
    %v747 = vpop.f32.mrb[0].mxu0
    %748 = vmatprep.mubr.f32.mxu0 0.0
    %749 = vmatmul.mubr.f32.gmra.mrb[0].mxu0 %v525
    %v750 = vpop.f32.mrb[0].mxu0
    %v751 = vadd.f32 %v432, %v750
    %v752 = vpop.f32.mrb[0].mxu0
    %753 = vmatprep.mubr.f32.mxu0 0.0
    %754 = vmatmul.mubr.f32.gmra.mrb[0].mxu0 %v528
    %v755 = vpop.f32.mrb[0].mxu0
    %v756 = vadd.f32 %v432, %v755
    %v757 = vpop.f32.mrb[0].mxu0
    %758 = vdwg.mxu0
    %v759 = vmax.f32 %v601, 0.0
    %v760 = vmax.f32 %v606, 0.0
    %v761 = vmax.f32 %v611, 0.0
    %v762 = vmax.f32 %v616, 0.0
    %v763 = vmax.f32 %v621, 0.0
    %v764 = vmax.f32 %v626, 0.0
    %v765 = vmax.f32 %v631, 0.0
    %v766 = vmax.f32 %v636, 0.0
    %v767 = vmax.f32 %v641, 0.0
    %v768 = vmax.f32 %v646, 0.0
    %v769 = vmax.f32 %v651, 0.0
    %v770 = vmax.f32 %v656, 0.0
    %v771 = vmax.f32 %v661, 0.0
    %v772 = vmax.f32 %v666, 0.0
    %v773 = vmax.f32 %v671, 0.0
    %v774 = vmax.f32 %v676, 0.0
    %v775 = vmax.f32 %v681, 0.0
    %v776 = vmax.f32 %v686, 0.0
    %v777 = vmax.f32 %v691, 0.0
    %v778 = vmax.f32 %v696, 0.0
    %v779 = vmax.f32 %v701, 0.0
    %v780 = vmax.f32 %v706, 0.0
    %v781 = vmax.f32 %v711, 0.0
    %v782 = vmax.f32 %v716, 0.0
    %v783 = vmax.f32 %v721, 0.0
    %v784 = vmax.f32 %v726, 0.0
    %v785 = vmax.f32 %v731, 0.0
    %v786 = vmax.f32 %v736, 0.0
    %v787 = vmax.f32 %v741, 0.0
    %v788 = vmax.f32 %v746, 0.0
    %v789 = vmax.f32 %v751, 0.0
    %v790 = vmax.f32 %v756, 0.0
    %v791 = vld [vmem:[#allocation2 + $0x48] sm:$0xff]
    %v792 = vld [vmem:[#allocation2 + $0x50] sm:$0xff]
    %v793 = vld [vmem:[#allocation2 + $0x58] sm:$0xff]
    %v794 = vld [vmem:[#allocation2 + $0x60] sm:$0xff]
    %v795 = vld [vmem:[#allocation2 + $0x68] sm:$0xff]
    %v796 = vld [vmem:[#allocation2 + $0x70] sm:$0xff]
    %v797 = vld [vmem:[#allocation2 + $0x78] sm:$0xff]
    %v798 = vld [vmem:[#allocation2 + $0x80] sm:$0xff]
    %v799 = vld [vmem:[#allocation2 + $0x88] sm:$0xff]
    %v800 = vld [vmem:[#allocation2 + $0x90] sm:$0xff]
    %v801 = vld [vmem:[#allocation2 + $0x98] sm:$0xff]
    %v802 = vld [vmem:[#allocation2 + $0xa0] sm:$0xff]
    %v803 = vld [vmem:[#allocation2 + $0xa8] sm:$0xff]
    %v804 = vld [vmem:[#allocation2 + $0xb0] sm:$0xff]
    %v805 = vld [vmem:[#allocation2 + $0xb8] sm:$0xff]
    %v806 = vld [vmem:[#allocation2 + $0xc0] sm:$0xff]
    %v807 = vld [vmem:[#allocation2 + $0xc8] sm:$0x1]
    %v808 = vlaneseq
    %v809 = vshrl.u32 %v808, 7
    %v810 = vsub.s32 0, %v809
    %v811 = vrot.slane %v807, %v810
    %812 = vmatprep.subr.mxu0 0.0
    %813 = vmatpush1.msra.mxu0 %v791
    %814 = vmatprep.subr.mxu0 0.0
    %815 = vmatpush1.msra.mxu0 %v792
    %816 = vmatprep.subr.mxu0 0.0
    %817 = vmatpush1.msra.mxu0 %v793
    %818 = vmatprep.subr.mxu0 0.0
    %819 = vmatpush1.msra.mxu0 %v794
    %820 = vmatprep.subr.mxu0 0.0
    %821 = vmatpush1.msra.mxu0 %v795
    %822 = vmatprep.subr.mxu0 0.0
    %823 = vmatpush1.msra.mxu0 %v796
    %824 = vmatprep.subr.mxu0 0.0
    %825 = vmatpush1.msra.mxu0 %v797
    %826 = vmatprep.subr.mxu0 0.0
    %827 = vmatpush1.msra.mxu0 %v798
    %828 = vmatprep.subr.mxu0 0.0
    %829 = vmatpush1.msra.mxu0 %v799
    %830 = vmatprep.subr.mxu0 0.0
    %831 = vmatpush1.msra.mxu0 %v800
    %832 = vmatprep.subr.mxu0 0.0
    %833 = vmatpush1.msra.mxu0 %v801
    %834 = vmatprep.subr.mxu0 0.0
    %835 = vmatpush1.msra.mxu0 %v802
    %836 = vmatprep.subr.mxu0 0.0
    %837 = vmatpush1.msra.mxu0 %v803
    %838 = vmatprep.subr.mxu0 0.0
    %839 = vmatpush1.msra.mxu0 %v804
    %840 = vmatprep.subr.mxu0 0.0
    %841 = vmatpush1.msra.mxu0 %v805
    %842 = vmatprep.subr.mxu0 0.0
    %843 = vmatpush1.msra.mxu0 %v806
    %844 = vmatprep.subr.mxu0 0.0
    %845 = vmatpush1.msra.mxu0 0.0
    %846 = vmatprep.subr.mxu0 0.0
    %847 = vmatpush1.msra.mxu0 0.0
    %848 = vmatprep.subr.mxu0 0.0
    %849 = vmatpush1.msra.mxu0 0.0
    %850 = vmatprep.subr.mxu0 0.0
    %851 = vmatpush1.msra.mxu0 0.0
    %852 = vmatprep.subr.mxu0 0.0
    %853 = vmatpush1.msra.mxu0 0.0
    %854 = vmatprep.subr.mxu0 0.0
    %855 = vmatpush1.msra.mxu0 0.0
    %856 = vmatprep.subr.mxu0 0.0
    %857 = vmatpush1.msra.mxu0 0.0
    %858 = vmatprep.subr.mxu0 0.0
    %859 = vmatpush1.msra.mxu0 0.0
    %860 = vmatprep.subr.mxu0 0.0
    %861 = vmatpush1.msra.mxu0 0.0
    %862 = vmatprep.subr.mxu0 0.0
    %863 = vmatpush1.msra.mxu0 0.0
    %864 = vmatprep.subr.mxu0 0.0
    %865 = vmatpush1.msra.mxu0 0.0
    %866 = vmatprep.subr.mxu0 0.0
    %867 = vmatpush1.msra.mxu0 0.0
    %868 = vmatprep.subr.mxu0 0.0
    %869 = vmatpush1.msra.mxu0 0.0
    %870 = vmatprep.subr.mxu0 0.0
    %871 = vmatpush1.msra.mxu0 0.0
    %872 = vmatprep.subr.mxu0 0.0
    %873 = vmatpush1.msra.mxu0 0.0
    %874 = vmatprep.subr.mxu0 0.0
    %875 = vmatpush1.msra.mxu0 0.0
    %876 = vmatprep.mubr.f32.mxu0 0.0
    %877 = vmatmul.mubr.f32.gmra.mrb[0].mxu0 %v759
    %v878 = vpop.f32.mrb[0].mxu0
    %v879 = vadd.f32 %v811, %v878
    %v880 = vpop.f32.mrb[0].mxu0
    %881 = vmatprep.mubr.f32.mxu0 0.0
    %882 = vmatmul.mubr.f32.gmra.mrb[0].mxu0 %v760
    %v883 = vpop.f32.mrb[0].mxu0
    %v884 = vadd.f32 %v811, %v883
    %v885 = vpop.f32.mrb[0].mxu0
    %886 = vmatprep.mubr.f32.mxu0 0.0
    %887 = vmatmul.mubr.f32.gmra.mrb[0].mxu0 %v761
    %v888 = vpop.f32.mrb[0].mxu0
    %v889 = vadd.f32 %v811, %v888
    %v890 = vpop.f32.mrb[0].mxu0
    %891 = vmatprep.mubr.f32.mxu0 0.0
    %892 = vmatmul.mubr.f32.gmra.mrb[0].mxu0 %v762
    %v893 = vpop.f32.mrb[0].mxu0
    %v894 = vadd.f32 %v811, %v893
    %v895 = vpop.f32.mrb[0].mxu0
    %896 = vmatprep.mubr.f32.mxu0 0.0
    %897 = vmatmul.mubr.f32.gmra.mrb[0].mxu0 %v763
    %v898 = vpop.f32.mrb[0].mxu0
    %v899 = vadd.f32 %v811, %v898
    %v900 = vpop.f32.mrb[0].mxu0
    %901 = vmatprep.mubr.f32.mxu0 0.0
    %902 = vmatmul.mubr.f32.gmra.mrb[0].mxu0 %v764
    %v903 = vpop.f32.mrb[0].mxu0
    %v904 = vadd.f32 %v811, %v903
    %v905 = vpop.f32.mrb[0].mxu0
    %906 = vmatprep.mubr.f32.mxu0 0.0
    %907 = vmatmul.mubr.f32.gmra.mrb[0].mxu0 %v765
    %v908 = vpop.f32.mrb[0].mxu0
    %v909 = vadd.f32 %v811, %v908
    %v910 = vpop.f32.mrb[0].mxu0
    %911 = vmatprep.mubr.f32.mxu0 0.0
    %912 = vmatmul.mubr.f32.gmra.mrb[0].mxu0 %v766
    %v913 = vpop.f32.mrb[0].mxu0
    %v914 = vadd.f32 %v811, %v913
    %v915 = vpop.f32.mrb[0].mxu0
    %916 = vmatprep.mubr.f32.mxu0 0.0
    %917 = vmatmul.mubr.f32.gmra.mrb[0].mxu0 %v767
    %v918 = vpop.f32.mrb[0].mxu0
    %v919 = vadd.f32 %v811, %v918
    %v920 = vpop.f32.mrb[0].mxu0
    %921 = vmatprep.mubr.f32.mxu0 0.0
    %922 = vmatmul.mubr.f32.gmra.mrb[0].mxu0 %v768
    %v923 = vpop.f32.mrb[0].mxu0
    %v924 = vadd.f32 %v811, %v923
    %v925 = vpop.f32.mrb[0].mxu0
    %926 = vmatprep.mubr.f32.mxu0 0.0
    %927 = vmatmul.mubr.f32.gmra.mrb[0].mxu0 %v769
    %v928 = vpop.f32.mrb[0].mxu0
    %v929 = vadd.f32 %v811, %v928
    %v930 = vpop.f32.mrb[0].mxu0
    %931 = vmatprep.mubr.f32.mxu0 0.0
    %932 = vmatmul.mubr.f32.gmra.mrb[0].mxu0 %v770
    %v933 = vpop.f32.mrb[0].mxu0
    %v934 = vadd.f32 %v811, %v933
    %v935 = vpop.f32.mrb[0].mxu0
    %936 = vmatprep.mubr.f32.mxu0 0.0
    %937 = vmatmul.mubr.f32.gmra.mrb[0].mxu0 %v771
    %v938 = vpop.f32.mrb[0].mxu0
    %v939 = vadd.f32 %v811, %v938
    %v940 = vpop.f32.mrb[0].mxu0
    %941 = vmatprep.mubr.f32.mxu0 0.0
    %942 = vmatmul.mubr.f32.gmra.mrb[0].mxu0 %v772
    %v943 = vpop.f32.mrb[0].mxu0
    %v944 = vadd.f32 %v811, %v943
    %v945 = vpop.f32.mrb[0].mxu0
    %946 = vmatprep.mubr.f32.mxu0 0.0
    %947 = vmatmul.mubr.f32.gmra.mrb[0].mxu0 %v773
    %v948 = vpop.f32.mrb[0].mxu0
    %v949 = vadd.f32 %v811, %v948
    %v950 = vpop.f32.mrb[0].mxu0
    %951 = vmatprep.mubr.f32.mxu0 0.0
    %952 = vmatmul.mubr.f32.gmra.mrb[0].mxu0 %v774
    %v953 = vpop.f32.mrb[0].mxu0
    %v954 = vadd.f32 %v811, %v953
    %v955 = vpop.f32.mrb[0].mxu0
    %956 = vmatprep.mubr.f32.mxu0 0.0
    %957 = vmatmul.mubr.f32.gmra.mrb[0].mxu0 %v775
    %v958 = vpop.f32.mrb[0].mxu0
    %v959 = vadd.f32 %v811, %v958
    %v960 = vpop.f32.mrb[0].mxu0
    %961 = vmatprep.mubr.f32.mxu0 0.0
    %962 = vmatmul.mubr.f32.gmra.mrb[0].mxu0 %v776
    %v963 = vpop.f32.mrb[0].mxu0
    %v964 = vadd.f32 %v811, %v963
    %v965 = vpop.f32.mrb[0].mxu0
    %966 = vmatprep.mubr.f32.mxu0 0.0
    %967 = vmatmul.mubr.f32.gmra.mrb[0].mxu0 %v777
    %v968 = vpop.f32.mrb[0].mxu0
    %v969 = vadd.f32 %v811, %v968
    %v970 = vpop.f32.mrb[0].mxu0
    %971 = vmatprep.mubr.f32.mxu0 0.0
    %972 = vmatmul.mubr.f32.gmra.mrb[0].mxu0 %v778
    %v973 = vpop.f32.mrb[0].mxu0
    %v974 = vadd.f32 %v811, %v973
    %v975 = vpop.f32.mrb[0].mxu0
    %976 = vmatprep.mubr.f32.mxu0 0.0
    %977 = vmatmul.mubr.f32.gmra.mrb[0].mxu0 %v779
    %v978 = vpop.f32.mrb[0].mxu0
    %v979 = vadd.f32 %v811, %v978
    %v980 = vpop.f32.mrb[0].mxu0
    %981 = vmatprep.mubr.f32.mxu0 0.0
    %982 = vmatmul.mubr.f32.gmra.mrb[0].mxu0 %v780
    %v983 = vpop.f32.mrb[0].mxu0
    %v984 = vadd.f32 %v811, %v983
    %v985 = vpop.f32.mrb[0].mxu0
    %986 = vmatprep.mubr.f32.mxu0 0.0
    %987 = vmatmul.mubr.f32.gmra.mrb[0].mxu0 %v781
    %v988 = vpop.f32.mrb[0].mxu0
    %v989 = vadd.f32 %v811, %v988
    %v990 = vpop.f32.mrb[0].mxu0
    %991 = vmatprep.mubr.f32.mxu0 0.0
    %992 = vmatmul.mubr.f32.gmra.mrb[0].mxu0 %v782
    %v993 = vpop.f32.mrb[0].mxu0
    %v994 = vadd.f32 %v811, %v993
    %v995 = vpop.f32.mrb[0].mxu0
    %996 = vmatprep.mubr.f32.mxu0 0.0
    %997 = vmatmul.mubr.f32.gmra.mrb[0].mxu0 %v783
    %v998 = vpop.f32.mrb[0].mxu0
    %v999 = vadd.f32 %v811, %v998
    %v1000 = vpop.f32.mrb[0].mxu0
    %1001 = vmatprep.mubr.f32.mxu0 0.0
    %1002 = vmatmul.mubr.f32.gmra.mrb[0].mxu0 %v784
    %v1003 = vpop.f32.mrb[0].mxu0
    %v1004 = vadd.f32 %v811, %v1003
    %v1005 = vpop.f32.mrb[0].mxu0
    %1006 = vmatprep.mubr.f32.mxu0 0.0
    %1007 = vmatmul.mubr.f32.gmra.mrb[0].mxu0 %v785
    %v1008 = vpop.f32.mrb[0].mxu0
    %v1009 = vadd.f32 %v811, %v1008
    %v1010 = vpop.f32.mrb[0].mxu0
    %1011 = vmatprep.mubr.f32.mxu0 0.0
    %1012 = vmatmul.mubr.f32.gmra.mrb[0].mxu0 %v786
    %v1013 = vpop.f32.mrb[0].mxu0
    %v1014 = vadd.f32 %v811, %v1013
    %v1015 = vpop.f32.mrb[0].mxu0
    %1016 = vmatprep.mubr.f32.mxu0 0.0
    %1017 = vmatmul.mubr.f32.gmra.mrb[0].mxu0 %v787
    %v1018 = vpop.f32.mrb[0].mxu0
    %v1019 = vadd.f32 %v811, %v1018
    %v1020 = vpop.f32.mrb[0].mxu0
    %1021 = vmatprep.mubr.f32.mxu0 0.0
    %1022 = vmatmul.mubr.f32.gmra.mrb[0].mxu0 %v788
    %v1023 = vpop.f32.mrb[0].mxu0
    %v1024 = vadd.f32 %v811, %v1023
    %v1025 = vpop.f32.mrb[0].mxu0
    %1026 = vmatprep.mubr.f32.mxu0 0.0
    %1027 = vmatmul.mubr.f32.gmra.mrb[0].mxu0 %v789
    %v1028 = vpop.f32.mrb[0].mxu0
    %v1029 = vadd.f32 %v811, %v1028
    %v1030 = vpop.f32.mrb[0].mxu0
    %1031 = vmatprep.mubr.f32.mxu0 0.0
    %1032 = vmatmul.mubr.f32.gmra.mrb[0].mxu0 %v790
    %v1033 = vpop.f32.mrb[0].mxu0
    %v1034 = vadd.f32 %v811, %v1033
    %v1035 = vpop.f32.mrb[0].mxu0
    %1036 = vdwg.mxu0
    %v1037 = vmax.f32 %v879, 0.0
    %v1038 = vmax.f32 %v884, 0.0
    %v1039 = vmax.f32 %v889, 0.0
    %v1040 = vmax.f32 %v894, 0.0
    %v1041 = vmax.f32 %v899, 0.0
    %v1042 = vmax.f32 %v904, 0.0
    %v1043 = vmax.f32 %v909, 0.0
    %v1044 = vmax.f32 %v914, 0.0
    %v1045 = vmax.f32 %v919, 0.0
    %v1046 = vmax.f32 %v924, 0.0
    %v1047 = vmax.f32 %v929, 0.0
    %v1048 = vmax.f32 %v934, 0.0
    %v1049 = vmax.f32 %v939, 0.0
    %v1050 = vmax.f32 %v944, 0.0
    %v1051 = vmax.f32 %v949, 0.0
    %v1052 = vmax.f32 %v954, 0.0
    %v1053 = vmax.f32 %v959, 0.0
    %v1054 = vmax.f32 %v964, 0.0
    %v1055 = vmax.f32 %v969, 0.0
    %v1056 = vmax.f32 %v974, 0.0
    %v1057 = vmax.f32 %v979, 0.0
    %v1058 = vmax.f32 %v984, 0.0
    %v1059 = vmax.f32 %v989, 0.0
    %v1060 = vmax.f32 %v994, 0.0
    %v1061 = vmax.f32 %v999, 0.0
    %v1062 = vmax.f32 %v1004, 0.0
    %v1063 = vmax.f32 %v1009, 0.0
    %v1064 = vmax.f32 %v1014, 0.0
    %v1065 = vmax.f32 %v1019, 0.0
    %v1066 = vmax.f32 %v1024, 0.0
    %v1067 = vmax.f32 %v1029, 0.0
    %v1068 = vmax.f32 %v1034, 0.0
    %v1069 = vld [vmem:[#allocation2 + $0xd0] sm:$0xff]
    %v1070 = vld [vmem:[#allocation2 + $0xd8] sm:$0xff]
    %v1071 = vld [vmem:[#allocation2 + $0xe0] sm:$0xff]
    %v1072 = vld [vmem:[#allocation2 + $0xe8] sm:$0xff]
    %v1073 = vld [vmem:[#allocation2 + $0xf0] sm:$0xff]
    %v1074 = vld [vmem:[#allocation2 + $0xf8] sm:$0xff]
    %v1075 = vld [vmem:[#allocation2 + $0x100] sm:$0xff]
    %v1076 = vld [vmem:[#allocation2 + $0x108] sm:$0xff]
    %v1077 = vld [vmem:[#allocation2 + $0x110] sm:$0xff]
    %v1078 = vld [vmem:[#allocation2 + $0x118] sm:$0xff]
    %v1079 = vld [vmem:[#allocation2 + $0x120] sm:$0x1]
    %v1080 = vlaneseq
    %v1081 = vshrl.u32 %v1080, 7
    %v1082 = vsub.s32 0, %v1081
    %v1083 = vrot.slane %v1079, %v1082
    %vm1084 = vcmask 654336
    %v1086 = vsel %vm1084, %v1037, 0
    %v1089 = vsel %vm1084, %v1038, 0
    %v1092 = vsel %vm1084, %v1039, 0
    %v1095 = vsel %vm1084, %v1040, 0
    %v1098 = vsel %vm1084, %v1041, 0
    %v1101 = vsel %vm1084, %v1042, 0
    %v1104 = vsel %vm1084, %v1043, 0
    %v1107 = vsel %vm1084, %v1044, 0
    %v1110 = vsel %vm1084, %v1045, 0
    %v1113 = vsel %vm1084, %v1046, 0
    %v1116 = vsel %vm1084, %v1047, 0
    %v1119 = vsel %vm1084, %v1048, 0
    %v1122 = vsel %vm1084, %v1049, 0
    %v1125 = vsel %vm1084, %v1050, 0
    %v1128 = vsel %vm1084, %v1051, 0
    %v1131 = vsel %vm1084, %v1052, 0
    %v1134 = vsel %vm1084, %v1053, 0
    %v1137 = vsel %vm1084, %v1054, 0
    %v1140 = vsel %vm1084, %v1055, 0
    %v1143 = vsel %vm1084, %v1056, 0
    %v1146 = vsel %vm1084, %v1057, 0
    %v1149 = vsel %vm1084, %v1058, 0
    %v1152 = vsel %vm1084, %v1059, 0
    %v1155 = vsel %vm1084, %v1060, 0
    %v1158 = vsel %vm1084, %v1061, 0
    %v1161 = vsel %vm1084, %v1062, 0
    %v1164 = vsel %vm1084, %v1063, 0
    %v1167 = vsel %vm1084, %v1064, 0
    %v1170 = vsel %vm1084, %v1065, 0
    %v1173 = vsel %vm1084, %v1066, 0
    %v1176 = vsel %vm1084, %v1067, 0
    %v1179 = vsel %vm1084, %v1068, 0
    %1181 = vmatprep.subr.mxu0 0.0
    %1182 = vmatpush1.msra.mxu0 %v1069
    %1183 = vmatprep.subr.mxu0 0.0
    %1184 = vmatpush1.msra.mxu0 %v1070
    %1185 = vmatprep.subr.mxu0 0.0
    %1186 = vmatpush1.msra.mxu0 %v1071
    %1187 = vmatprep.subr.mxu0 0.0
    %1188 = vmatpush1.msra.mxu0 %v1072
    %1189 = vmatprep.subr.mxu0 0.0
    %1190 = vmatpush1.msra.mxu0 %v1073
    %1191 = vmatprep.subr.mxu0 0.0
    %1192 = vmatpush1.msra.mxu0 %v1074
    %1193 = vmatprep.subr.mxu0 0.0
    %1194 = vmatpush1.msra.mxu0 %v1075
    %1195 = vmatprep.subr.mxu0 0.0
    %1196 = vmatpush1.msra.mxu0 %v1076
    %1197 = vmatprep.subr.mxu0 0.0
    %1198 = vmatpush1.msra.mxu0 %v1077
    %1199 = vmatprep.subr.mxu0 0.0
    %1200 = vmatpush1.msra.mxu0 %v1078
    %1201 = vmatprep.subr.mxu0 0.0
    %1202 = vmatpush1.msra.mxu0 0.0
    %1203 = vmatprep.subr.mxu0 0.0
    %1204 = vmatpush1.msra.mxu0 0.0
    %1205 = vmatprep.subr.mxu0 0.0
    %1206 = vmatpush1.msra.mxu0 0.0
    %1207 = vmatprep.subr.mxu0 0.0
    %1208 = vmatpush1.msra.mxu0 0.0
    %1209 = vmatprep.subr.mxu0 0.0
    %1210 = vmatpush1.msra.mxu0 0.0
    %1211 = vmatprep.subr.mxu0 0.0
    %1212 = vmatpush1.msra.mxu0 0.0
    %1213 = vmatprep.subr.mxu0 0.0
    %1214 = vmatpush1.msra.mxu0 0.0
    %1215 = vmatprep.subr.mxu0 0.0
    %1216 = vmatpush1.msra.mxu0 0.0
    %1217 = vmatprep.subr.mxu0 0.0
    %1218 = vmatpush1.msra.mxu0 0.0
    %1219 = vmatprep.subr.mxu0 0.0
    %1220 = vmatpush1.msra.mxu0 0.0
    %1221 = vmatprep.subr.mxu0 0.0
    %1222 = vmatpush1.msra.mxu0 0.0
    %1223 = vmatprep.subr.mxu0 0.0
    %1224 = vmatpush1.msra.mxu0 0.0
    %1225 = vmatprep.subr.mxu0 0.0
    %1226 = vmatpush1.msra.mxu0 0.0
    %1227 = vmatprep.subr.mxu0 0.0
    %1228 = vmatpush1.msra.mxu0 0.0
    %1229 = vmatprep.subr.mxu0 0.0
    %1230 = vmatpush1.msra.mxu0 0.0
    %1231 = vmatprep.subr.mxu0 0.0
    %1232 = vmatpush1.msra.mxu0 0.0
    %1233 = vmatprep.subr.mxu0 0.0
    %1234 = vmatpush1.msra.mxu0 0.0
    %1235 = vmatprep.subr.mxu0 0.0
    %1236 = vmatpush1.msra.mxu0 0.0
    %1237 = vmatprep.subr.mxu0 0.0
    %1238 = vmatpush1.msra.mxu0 0.0
    %1239 = vmatprep.subr.mxu0 0.0
    %1240 = vmatpush1.msra.mxu0 0.0
    %1241 = vmatprep.subr.mxu0 0.0
    %1242 = vmatpush1.msra.mxu0 0.0
    %1243 = vmatprep.subr.mxu0 0.0
    %1244 = vmatpush1.msra.mxu0 0.0
    %1245 = vmatprep.mubr.f32.mxu0 0.0
    %1246 = vmatmul.mubr.f32.gmra.mrb[0].mxu0 %v1086
    %v1247 = vpop.f32.mrb[0].mxu0
    %v1248 = vadd.f32 %v1083, %v1247
    %v1249 = vpop.f32.mrb[0].mxu0
    %1250 = vmatprep.mubr.f32.mxu0 0.0
    %1251 = vmatmul.mubr.f32.gmra.mrb[0].mxu0 %v1089
    %v1252 = vpop.f32.mrb[0].mxu0
    %v1253 = vadd.f32 %v1083, %v1252
    %v1254 = vpop.f32.mrb[0].mxu0
    %1255 = vmatprep.mubr.f32.mxu0 0.0
    %1256 = vmatmul.mubr.f32.gmra.mrb[0].mxu0 %v1092
    %v1257 = vpop.f32.mrb[0].mxu0
    %v1258 = vadd.f32 %v1083, %v1257
    %v1259 = vpop.f32.mrb[0].mxu0
    %1260 = vmatprep.mubr.f32.mxu0 0.0
    %1261 = vmatmul.mubr.f32.gmra.mrb[0].mxu0 %v1095
    %v1262 = vpop.f32.mrb[0].mxu0
    %v1263 = vadd.f32 %v1083, %v1262
    %v1264 = vpop.f32.mrb[0].mxu0
    %1265 = vmatprep.mubr.f32.mxu0 0.0
    %1266 = vmatmul.mubr.f32.gmra.mrb[0].mxu0 %v1098
    %v1267 = vpop.f32.mrb[0].mxu0
    %v1268 = vadd.f32 %v1083, %v1267
    %v1269 = vpop.f32.mrb[0].mxu0
    %1270 = vmatprep.mubr.f32.mxu0 0.0
    %1271 = vmatmul.mubr.f32.gmra.mrb[0].mxu0 %v1101
    %v1272 = vpop.f32.mrb[0].mxu0
    %v1273 = vadd.f32 %v1083, %v1272
    %v1274 = vpop.f32.mrb[0].mxu0
    %1275 = vmatprep.mubr.f32.mxu0 0.0
    %1276 = vmatmul.mubr.f32.gmra.mrb[0].mxu0 %v1104
    %v1277 = vpop.f32.mrb[0].mxu0
    %v1278 = vadd.f32 %v1083, %v1277
    %v1279 = vpop.f32.mrb[0].mxu0
    %1280 = vmatprep.mubr.f32.mxu0 0.0
    %1281 = vmatmul.mubr.f32.gmra.mrb[0].mxu0 %v1107
    %v1282 = vpop.f32.mrb[0].mxu0
    %v1283 = vadd.f32 %v1083, %v1282
    %v1284 = vpop.f32.mrb[0].mxu0
    %1285 = vmatprep.mubr.f32.mxu0 0.0
    %1286 = vmatmul.mubr.f32.gmra.mrb[0].mxu0 %v1110
    %v1287 = vpop.f32.mrb[0].mxu0
    %v1288 = vadd.f32 %v1083, %v1287
    %v1289 = vpop.f32.mrb[0].mxu0
    %1290 = vmatprep.mubr.f32.mxu0 0.0
    %1291 = vmatmul.mubr.f32.gmra.mrb[0].mxu0 %v1113
    %v1292 = vpop.f32.mrb[0].mxu0
    %v1293 = vadd.f32 %v1083, %v1292
    %v1294 = vpop.f32.mrb[0].mxu0
    %1295 = vmatprep.mubr.f32.mxu0 0.0
    %1296 = vmatmul.mubr.f32.gmra.mrb[0].mxu0 %v1116
    %v1297 = vpop.f32.mrb[0].mxu0
    %v1298 = vadd.f32 %v1083, %v1297
    %v1299 = vpop.f32.mrb[0].mxu0
    %1300 = vmatprep.mubr.f32.mxu0 0.0
    %1301 = vmatmul.mubr.f32.gmra.mrb[0].mxu0 %v1119
    %v1302 = vpop.f32.mrb[0].mxu0
    %v1303 = vadd.f32 %v1083, %v1302
    %v1304 = vpop.f32.mrb[0].mxu0
    %1305 = vmatprep.mubr.f32.mxu0 0.0
    %1306 = vmatmul.mubr.f32.gmra.mrb[0].mxu0 %v1122
    %v1307 = vpop.f32.mrb[0].mxu0
    %v1308 = vadd.f32 %v1083, %v1307
    %v1309 = vpop.f32.mrb[0].mxu0
    %1310 = vmatprep.mubr.f32.mxu0 0.0
    %1311 = vmatmul.mubr.f32.gmra.mrb[0].mxu0 %v1125
    %v1312 = vpop.f32.mrb[0].mxu0
    %v1313 = vadd.f32 %v1083, %v1312
    %v1314 = vpop.f32.mrb[0].mxu0
    %1315 = vmatprep.mubr.f32.mxu0 0.0
    %1316 = vmatmul.mubr.f32.gmra.mrb[0].mxu0 %v1128
    %v1317 = vpop.f32.mrb[0].mxu0
    %v1318 = vadd.f32 %v1083, %v1317
    %v1319 = vpop.f32.mrb[0].mxu0
    %1320 = vmatprep.mubr.f32.mxu0 0.0
    %1321 = vmatmul.mubr.f32.gmra.mrb[0].mxu0 %v1131
    %v1322 = vpop.f32.mrb[0].mxu0
    %v1323 = vadd.f32 %v1083, %v1322
    %v1324 = vpop.f32.mrb[0].mxu0
    %1325 = vmatprep.mubr.f32.mxu0 0.0
    %1326 = vmatmul.mubr.f32.gmra.mrb[0].mxu0 %v1134
    %v1327 = vpop.f32.mrb[0].mxu0
    %v1328 = vadd.f32 %v1083, %v1327
    %v1329 = vpop.f32.mrb[0].mxu0
    %1330 = vmatprep.mubr.f32.mxu0 0.0
    %1331 = vmatmul.mubr.f32.gmra.mrb[0].mxu0 %v1137
    %v1332 = vpop.f32.mrb[0].mxu0
    %v1333 = vadd.f32 %v1083, %v1332
    %v1334 = vpop.f32.mrb[0].mxu0
    %1335 = vmatprep.mubr.f32.mxu0 0.0
    %1336 = vmatmul.mubr.f32.gmra.mrb[0].mxu0 %v1140
    %v1337 = vpop.f32.mrb[0].mxu0
    %v1338 = vadd.f32 %v1083, %v1337
    %v1339 = vpop.f32.mrb[0].mxu0
    %1340 = vmatprep.mubr.f32.mxu0 0.0
    %1341 = vmatmul.mubr.f32.gmra.mrb[0].mxu0 %v1143
    %v1342 = vpop.f32.mrb[0].mxu0
    %v1343 = vadd.f32 %v1083, %v1342
    %v1344 = vpop.f32.mrb[0].mxu0
    %1345 = vmatprep.mubr.f32.mxu0 0.0
    %1346 = vmatmul.mubr.f32.gmra.mrb[0].mxu0 %v1146
    %v1347 = vpop.f32.mrb[0].mxu0
    %v1348 = vadd.f32 %v1083, %v1347
    %v1349 = vpop.f32.mrb[0].mxu0
    %1350 = vmatprep.mubr.f32.mxu0 0.0
    %1351 = vmatmul.mubr.f32.gmra.mrb[0].mxu0 %v1149
    %v1352 = vpop.f32.mrb[0].mxu0
    %v1353 = vadd.f32 %v1083, %v1352
    %v1354 = vpop.f32.mrb[0].mxu0
    %1355 = vmatprep.mubr.f32.mxu0 0.0
    %1356 = vmatmul.mubr.f32.gmra.mrb[0].mxu0 %v1152
    %v1357 = vpop.f32.mrb[0].mxu0
    %v1358 = vadd.f32 %v1083, %v1357
    %v1359 = vpop.f32.mrb[0].mxu0
    %1360 = vmatprep.mubr.f32.mxu0 0.0
    %1361 = vmatmul.mubr.f32.gmra.mrb[0].mxu0 %v1155
    %v1362 = vpop.f32.mrb[0].mxu0
    %v1363 = vadd.f32 %v1083, %v1362
    %v1364 = vpop.f32.mrb[0].mxu0
    %1365 = vmatprep.mubr.f32.mxu0 0.0
    %1366 = vmatmul.mubr.f32.gmra.mrb[0].mxu0 %v1158
    %v1367 = vpop.f32.mrb[0].mxu0
    %v1368 = vadd.f32 %v1083, %v1367
    %v1369 = vpop.f32.mrb[0].mxu0
    %1370 = vmatprep.mubr.f32.mxu0 0.0
    %1371 = vmatmul.mubr.f32.gmra.mrb[0].mxu0 %v1161
    %v1372 = vpop.f32.mrb[0].mxu0
    %v1373 = vadd.f32 %v1083, %v1372
    %v1374 = vpop.f32.mrb[0].mxu0
    %1375 = vmatprep.mubr.f32.mxu0 0.0
    %1376 = vmatmul.mubr.f32.gmra.mrb[0].mxu0 %v1164
    %v1377 = vpop.f32.mrb[0].mxu0
    %v1378 = vadd.f32 %v1083, %v1377
    %v1379 = vpop.f32.mrb[0].mxu0
    %1380 = vmatprep.mubr.f32.mxu0 0.0
    %1381 = vmatmul.mubr.f32.gmra.mrb[0].mxu0 %v1167
    %v1382 = vpop.f32.mrb[0].mxu0
    %v1383 = vadd.f32 %v1083, %v1382
    %v1384 = vpop.f32.mrb[0].mxu0
    %1385 = vmatprep.mubr.f32.mxu0 0.0
    %1386 = vmatmul.mubr.f32.gmra.mrb[0].mxu0 %v1170
    %v1387 = vpop.f32.mrb[0].mxu0
    %v1388 = vadd.f32 %v1083, %v1387
    %v1389 = vpop.f32.mrb[0].mxu0
    %1390 = vmatprep.mubr.f32.mxu0 0.0
    %1391 = vmatmul.mubr.f32.gmra.mrb[0].mxu0 %v1173
    %v1392 = vpop.f32.mrb[0].mxu0
    %v1393 = vadd.f32 %v1083, %v1392
    %v1394 = vpop.f32.mrb[0].mxu0
    %1395 = vmatprep.mubr.f32.mxu0 0.0
    %1396 = vmatmul.mubr.f32.gmra.mrb[0].mxu0 %v1176
    %v1397 = vpop.f32.mrb[0].mxu0
    %v1398 = vadd.f32 %v1083, %v1397
    %v1399 = vpop.f32.mrb[0].mxu0
    %1400 = vmatprep.mubr.f32.mxu0 0.0
    %1401 = vmatmul.mubr.f32.gmra.mrb[0].mxu0 %v1179
    %v1402 = vpop.f32.mrb[0].mxu0
    %v1403 = vadd.f32 %v1083, %v1402
    %v1404 = vpop.f32.mrb[0].mxu0
    %1405 = vdwg.mxu0
    %v1406 = vmax.f32 %v1248, 0.0
    %v1407 = vmax.f32 %v1253, 0.0
    %v1408 = vmax.f32 %v1258, 0.0
    %v1409 = vmax.f32 %v1263, 0.0
    %v1410 = vmax.f32 %v1268, 0.0
    %v1411 = vmax.f32 %v1273, 0.0
    %v1412 = vmax.f32 %v1278, 0.0
    %v1413 = vmax.f32 %v1283, 0.0
    %v1414 = vmax.f32 %v1288, 0.0
    %v1415 = vmax.f32 %v1293, 0.0
    %v1416 = vmax.f32 %v1298, 0.0
    %v1417 = vmax.f32 %v1303, 0.0
    %v1418 = vmax.f32 %v1308, 0.0
    %v1419 = vmax.f32 %v1313, 0.0
    %v1420 = vmax.f32 %v1318, 0.0
    %v1421 = vmax.f32 %v1323, 0.0
    %v1422 = vmax.f32 %v1328, 0.0
    %v1423 = vmax.f32 %v1333, 0.0
    %v1424 = vmax.f32 %v1338, 0.0
    %v1425 = vmax.f32 %v1343, 0.0
    %v1426 = vmax.f32 %v1348, 0.0
    %v1427 = vmax.f32 %v1353, 0.0
    %v1428 = vmax.f32 %v1358, 0.0
    %v1429 = vmax.f32 %v1363, 0.0
    %v1430 = vmax.f32 %v1368, 0.0
    %v1431 = vmax.f32 %v1373, 0.0
    %v1432 = vmax.f32 %v1378, 0.0
    %v1433 = vmax.f32 %v1383, 0.0
    %v1434 = vmax.f32 %v1388, 0.0
    %v1435 = vmax.f32 %v1393, 0.0
    %v1436 = vmax.f32 %v1398, 0.0
    %v1437 = vmax.f32 %v1403, 0.0
    %v1438 = vld [vmem:[#allocation2 + $0x128] sm:$0xff]
    %v1439 = vld [vmem:[#allocation2 + $0x130] sm:$0xff]
    %v1440 = vld [vmem:[#allocation2 + $0x138] sm:$0xff]
    %v1441 = vld [vmem:[#allocation2 + $0x140] sm:$0xff]
    %v1442 = vld [vmem:[#allocation2 + $0x148] sm:$0xff]
    %v1443 = vld [vmem:[#allocation2 + $0x150] sm:$0xff]
    %v1444 = vld [vmem:[#allocation2 + $0x158] sm:$0x3]
    %v1445 = vld [vmem:[#allocation2 + $0x160] sm:$0x1]
    %v1446 = vlaneseq
    %v1447 = vshrl.u32 %v1446, 7
    %v1448 = vsub.s32 0, %v1447
    %v1449 = vrot.slane %v1445, %v1448
    %vm1450 = vcmask 408576
    %v1452 = vsel %vm1450, %v1406, 0
    %v1455 = vsel %vm1450, %v1407, 0
    %v1458 = vsel %vm1450, %v1408, 0
    %v1461 = vsel %vm1450, %v1409, 0
    %v1464 = vsel %vm1450, %v1410, 0
    %v1467 = vsel %vm1450, %v1411, 0
    %v1470 = vsel %vm1450, %v1412, 0
    %v1473 = vsel %vm1450, %v1413, 0
    %v1476 = vsel %vm1450, %v1414, 0
    %v1479 = vsel %vm1450, %v1415, 0
    %v1482 = vsel %vm1450, %v1416, 0
    %v1485 = vsel %vm1450, %v1417, 0
    %v1488 = vsel %vm1450, %v1418, 0
    %v1491 = vsel %vm1450, %v1419, 0
    %v1494 = vsel %vm1450, %v1420, 0
    %v1497 = vsel %vm1450, %v1421, 0
    %v1500 = vsel %vm1450, %v1422, 0
    %v1503 = vsel %vm1450, %v1423, 0
    %v1506 = vsel %vm1450, %v1424, 0
    %v1509 = vsel %vm1450, %v1425, 0
    %v1512 = vsel %vm1450, %v1426, 0
    %v1515 = vsel %vm1450, %v1427, 0
    %v1518 = vsel %vm1450, %v1428, 0
    %v1521 = vsel %vm1450, %v1429, 0
    %v1524 = vsel %vm1450, %v1430, 0
    %v1527 = vsel %vm1450, %v1431, 0
    %v1530 = vsel %vm1450, %v1432, 0
    %v1533 = vsel %vm1450, %v1433, 0
    %v1536 = vsel %vm1450, %v1434, 0
    %v1539 = vsel %vm1450, %v1435, 0
    %v1542 = vsel %vm1450, %v1436, 0
    %v1545 = vsel %vm1450, %v1437, 0
    %vm1547 = vcmask 1041408
    %v1549 = vsel %vm1547, %v1444, 0
    %1551 = vmatprep.subr.mxu0 0.0
    %1552 = vmatpush1.msra.mxu0 %v1438
    %1553 = vmatprep.subr.mxu0 0.0
    %1554 = vmatpush1.msra.mxu0 %v1439
    %1555 = vmatprep.subr.mxu0 0.0
    %1556 = vmatpush1.msra.mxu0 %v1440
    %1557 = vmatprep.subr.mxu0 0.0
    %1558 = vmatpush1.msra.mxu0 %v1441
    %1559 = vmatprep.subr.mxu0 0.0
    %1560 = vmatpush1.msra.mxu0 %v1442
    %1561 = vmatprep.subr.mxu0 0.0
    %1562 = vmatpush1.msra.mxu0 %v1443
    %1563 = vmatprep.subr.mxu0 0.0
    %1564 = vmatpush1.msra.mxu0 %v1549
    %1565 = vmatprep.subr.mxu0 0.0
    %1566 = vmatpush1.msra.mxu0 0.0
    %1567 = vmatprep.subr.mxu0 0.0
    %1568 = vmatpush1.msra.mxu0 0.0
    %1569 = vmatprep.subr.mxu0 0.0
    %1570 = vmatpush1.msra.mxu0 0.0
    %1571 = vmatprep.subr.mxu0 0.0
    %1572 = vmatpush1.msra.mxu0 0.0
    %1573 = vmatprep.subr.mxu0 0.0
    %1574 = vmatpush1.msra.mxu0 0.0
    %1575 = vmatprep.subr.mxu0 0.0
    %1576 = vmatpush1.msra.mxu0 0.0
    %1577 = vmatprep.subr.mxu0 0.0
    %1578 = vmatpush1.msra.mxu0 0.0
    %1579 = vmatprep.subr.mxu0 0.0
    %1580 = vmatpush1.msra.mxu0 0.0
    %1581 = vmatprep.subr.mxu0 0.0
    %1582 = vmatpush1.msra.mxu0 0.0
    %1583 = vmatprep.subr.mxu0 0.0
    %1584 = vmatpush1.msra.mxu0 0.0
    %1585 = vmatprep.subr.mxu0 0.0
    %1586 = vmatpush1.msra.mxu0 0.0
    %1587 = vmatprep.subr.mxu0 0.0
    %1588 = vmatpush1.msra.mxu0 0.0
    %1589 = vmatprep.subr.mxu0 0.0
    %1590 = vmatpush1.msra.mxu0 0.0
    %1591 = vmatprep.subr.mxu0 0.0
    %1592 = vmatpush1.msra.mxu0 0.0
    %1593 = vmatprep.subr.mxu0 0.0
    %1594 = vmatpush1.msra.mxu0 0.0
    %1595 = vmatprep.subr.mxu0 0.0
    %1596 = vmatpush1.msra.mxu0 0.0
    %1597 = vmatprep.subr.mxu0 0.0
    %1598 = vmatpush1.msra.mxu0 0.0
    %1599 = vmatprep.subr.mxu0 0.0
    %1600 = vmatpush1.msra.mxu0 0.0
    %1601 = vmatprep.subr.mxu0 0.0
    %1602 = vmatpush1.msra.mxu0 0.0
    %1603 = vmatprep.subr.mxu0 0.0
    %1604 = vmatpush1.msra.mxu0 0.0
    %1605 = vmatprep.subr.mxu0 0.0
    %1606 = vmatpush1.msra.mxu0 0.0
    %1607 = vmatprep.subr.mxu0 0.0
    %1608 = vmatpush1.msra.mxu0 0.0
    %1609 = vmatprep.subr.mxu0 0.0
    %1610 = vmatpush1.msra.mxu0 0.0
    %1611 = vmatprep.subr.mxu0 0.0
    %1612 = vmatpush1.msra.mxu0 0.0
    %1613 = vmatprep.subr.mxu0 0.0
    %1614 = vmatpush1.msra.mxu0 0.0
    %1615 = vmatprep.mubr.f32.mxu0 0.0
    %1616 = vmatmul.mubr.f32.gmra.mrb[0].mxu0 %v1452
    %v1617 = vpop.f32.mrb[0].mxu0
    %v1618 = vadd.f32 %v1449, %v1617
    %v1619 = vpop.f32.mrb[0].mxu0
    %1620 = vmatprep.mubr.f32.mxu0 0.0
    %1621 = vmatmul.mubr.f32.gmra.mrb[0].mxu0 %v1455
    %v1622 = vpop.f32.mrb[0].mxu0
    %v1623 = vadd.f32 %v1449, %v1622
    %v1624 = vpop.f32.mrb[0].mxu0
    %1625 = vmatprep.mubr.f32.mxu0 0.0
    %1626 = vmatmul.mubr.f32.gmra.mrb[0].mxu0 %v1458
    %v1627 = vpop.f32.mrb[0].mxu0
    %v1628 = vadd.f32 %v1449, %v1627
    %v1629 = vpop.f32.mrb[0].mxu0
    %1630 = vmatprep.mubr.f32.mxu0 0.0
    %1631 = vmatmul.mubr.f32.gmra.mrb[0].mxu0 %v1461
    %v1632 = vpop.f32.mrb[0].mxu0
    %v1633 = vadd.f32 %v1449, %v1632
    %v1634 = vpop.f32.mrb[0].mxu0
    %1635 = vmatprep.mubr.f32.mxu0 0.0
    %1636 = vmatmul.mubr.f32.gmra.mrb[0].mxu0 %v1464
    %v1637 = vpop.f32.mrb[0].mxu0
    %v1638 = vadd.f32 %v1449, %v1637
    %v1639 = vpop.f32.mrb[0].mxu0
    %1640 = vmatprep.mubr.f32.mxu0 0.0
    %1641 = vmatmul.mubr.f32.gmra.mrb[0].mxu0 %v1467
    %v1642 = vpop.f32.mrb[0].mxu0
    %v1643 = vadd.f32 %v1449, %v1642
    %v1644 = vpop.f32.mrb[0].mxu0
    %1645 = vmatprep.mubr.f32.mxu0 0.0
    %1646 = vmatmul.mubr.f32.gmra.mrb[0].mxu0 %v1470
    %v1647 = vpop.f32.mrb[0].mxu0
    %v1648 = vadd.f32 %v1449, %v1647
    %v1649 = vpop.f32.mrb[0].mxu0
    %1650 = vmatprep.mubr.f32.mxu0 0.0
    %1651 = vmatmul.mubr.f32.gmra.mrb[0].mxu0 %v1473
    %v1652 = vpop.f32.mrb[0].mxu0
    %v1653 = vadd.f32 %v1449, %v1652
    %v1654 = vpop.f32.mrb[0].mxu0
    %1655 = vmatprep.mubr.f32.mxu0 0.0
    %1656 = vmatmul.mubr.f32.gmra.mrb[0].mxu0 %v1476
    %v1657 = vpop.f32.mrb[0].mxu0
    %v1658 = vadd.f32 %v1449, %v1657
    %v1659 = vpop.f32.mrb[0].mxu0
    %1660 = vmatprep.mubr.f32.mxu0 0.0
    %1661 = vmatmul.mubr.f32.gmra.mrb[0].mxu0 %v1479
    %v1662 = vpop.f32.mrb[0].mxu0
    %v1663 = vadd.f32 %v1449, %v1662
    %v1664 = vpop.f32.mrb[0].mxu0
    %1665 = vmatprep.mubr.f32.mxu0 0.0
    %1666 = vmatmul.mubr.f32.gmra.mrb[0].mxu0 %v1482
    %v1667 = vpop.f32.mrb[0].mxu0
    %v1668 = vadd.f32 %v1449, %v1667
    %v1669 = vpop.f32.mrb[0].mxu0
    %1670 = vmatprep.mubr.f32.mxu0 0.0
    %1671 = vmatmul.mubr.f32.gmra.mrb[0].mxu0 %v1485
    %v1672 = vpop.f32.mrb[0].mxu0
    %v1673 = vadd.f32 %v1449, %v1672
    %v1674 = vpop.f32.mrb[0].mxu0
    %1675 = vmatprep.mubr.f32.mxu0 0.0
    %1676 = vmatmul.mubr.f32.gmra.mrb[0].mxu0 %v1488
    %v1677 = vpop.f32.mrb[0].mxu0
    %v1678 = vadd.f32 %v1449, %v1677
    %v1679 = vpop.f32.mrb[0].mxu0
    %1680 = vmatprep.mubr.f32.mxu0 0.0
    %1681 = vmatmul.mubr.f32.gmra.mrb[0].mxu0 %v1491
    %v1682 = vpop.f32.mrb[0].mxu0
    %v1683 = vadd.f32 %v1449, %v1682
    %v1684 = vpop.f32.mrb[0].mxu0
    %1685 = vmatprep.mubr.f32.mxu0 0.0
    %1686 = vmatmul.mubr.f32.gmra.mrb[0].mxu0 %v1494
    %v1687 = vpop.f32.mrb[0].mxu0
    %v1688 = vadd.f32 %v1449, %v1687
    %v1689 = vpop.f32.mrb[0].mxu0
    %1690 = vmatprep.mubr.f32.mxu0 0.0
    %1691 = vmatmul.mubr.f32.gmra.mrb[0].mxu0 %v1497
    %v1692 = vpop.f32.mrb[0].mxu0
    %v1693 = vadd.f32 %v1449, %v1692
    %v1694 = vpop.f32.mrb[0].mxu0
    %1695 = vmatprep.mubr.f32.mxu0 0.0
    %1696 = vmatmul.mubr.f32.gmra.mrb[0].mxu0 %v1500
    %v1697 = vpop.f32.mrb[0].mxu0
    %v1698 = vadd.f32 %v1449, %v1697
    %v1699 = vpop.f32.mrb[0].mxu0
    %1700 = vmatprep.mubr.f32.mxu0 0.0
    %1701 = vmatmul.mubr.f32.gmra.mrb[0].mxu0 %v1503
    %v1702 = vpop.f32.mrb[0].mxu0
    %v1703 = vadd.f32 %v1449, %v1702
    %v1704 = vpop.f32.mrb[0].mxu0
    %1705 = vmatprep.mubr.f32.mxu0 0.0
    %1706 = vmatmul.mubr.f32.gmra.mrb[0].mxu0 %v1506
    %v1707 = vpop.f32.mrb[0].mxu0
    %v1708 = vadd.f32 %v1449, %v1707
    %v1709 = vpop.f32.mrb[0].mxu0
    %1710 = vmatprep.mubr.f32.mxu0 0.0
    %1711 = vmatmul.mubr.f32.gmra.mrb[0].mxu0 %v1509
    %v1712 = vpop.f32.mrb[0].mxu0
    %v1713 = vadd.f32 %v1449, %v1712
    %v1714 = vpop.f32.mrb[0].mxu0
    %1715 = vmatprep.mubr.f32.mxu0 0.0
    %1716 = vmatmul.mubr.f32.gmra.mrb[0].mxu0 %v1512
    %v1717 = vpop.f32.mrb[0].mxu0
    %v1718 = vadd.f32 %v1449, %v1717
    %v1719 = vpop.f32.mrb[0].mxu0
    %1720 = vmatprep.mubr.f32.mxu0 0.0
    %1721 = vmatmul.mubr.f32.gmra.mrb[0].mxu0 %v1515
    %v1722 = vpop.f32.mrb[0].mxu0
    %v1723 = vadd.f32 %v1449, %v1722
    %v1724 = vpop.f32.mrb[0].mxu0
    %1725 = vmatprep.mubr.f32.mxu0 0.0
    %1726 = vmatmul.mubr.f32.gmra.mrb[0].mxu0 %v1518
    %v1727 = vpop.f32.mrb[0].mxu0
    %v1728 = vadd.f32 %v1449, %v1727
    %v1729 = vpop.f32.mrb[0].mxu0
    %1730 = vmatprep.mubr.f32.mxu0 0.0
    %1731 = vmatmul.mubr.f32.gmra.mrb[0].mxu0 %v1521
    %v1732 = vpop.f32.mrb[0].mxu0
    %v1733 = vadd.f32 %v1449, %v1732
    %v1734 = vpop.f32.mrb[0].mxu0
    %1735 = vmatprep.mubr.f32.mxu0 0.0
    %1736 = vmatmul.mubr.f32.gmra.mrb[0].mxu0 %v1524
    %v1737 = vpop.f32.mrb[0].mxu0
    %v1738 = vadd.f32 %v1449, %v1737
    %v1739 = vpop.f32.mrb[0].mxu0
    %1740 = vmatprep.mubr.f32.mxu0 0.0
    %1741 = vmatmul.mubr.f32.gmra.mrb[0].mxu0 %v1527
    %v1742 = vpop.f32.mrb[0].mxu0
    %v1743 = vadd.f32 %v1449, %v1742
    %v1744 = vpop.f32.mrb[0].mxu0
    %1745 = vmatprep.mubr.f32.mxu0 0.0
    %1746 = vmatmul.mubr.f32.gmra.mrb[0].mxu0 %v1530
    %v1747 = vpop.f32.mrb[0].mxu0
    %v1748 = vadd.f32 %v1449, %v1747
    %v1749 = vpop.f32.mrb[0].mxu0
    %1750 = vmatprep.mubr.f32.mxu0 0.0
    %1751 = vmatmul.mubr.f32.gmra.mrb[0].mxu0 %v1533
    %v1752 = vpop.f32.mrb[0].mxu0
    %v1753 = vadd.f32 %v1449, %v1752
    %v1754 = vpop.f32.mrb[0].mxu0
    %1755 = vmatprep.mubr.f32.mxu0 0.0
    %1756 = vmatmul.mubr.f32.gmra.mrb[0].mxu0 %v1536
    %v1757 = vpop.f32.mrb[0].mxu0
    %v1758 = vadd.f32 %v1449, %v1757
    %v1759 = vpop.f32.mrb[0].mxu0
    %1760 = vmatprep.mubr.f32.mxu0 0.0
    %1761 = vmatmul.mubr.f32.gmra.mrb[0].mxu0 %v1539
    %v1762 = vpop.f32.mrb[0].mxu0
    %v1763 = vadd.f32 %v1449, %v1762
    %v1764 = vpop.f32.mrb[0].mxu0
    %1765 = vmatprep.mubr.f32.mxu0 0.0
    %1766 = vmatmul.mubr.f32.gmra.mrb[0].mxu0 %v1542
    %v1767 = vpop.f32.mrb[0].mxu0
    %v1768 = vadd.f32 %v1449, %v1767
    %v1769 = vpop.f32.mrb[0].mxu0
    %1770 = vmatprep.mubr.f32.mxu0 0.0
    %1771 = vmatmul.mubr.f32.gmra.mrb[0].mxu0 %v1545
    %v1772 = vpop.f32.mrb[0].mxu0
    %v1773 = vadd.f32 %v1449, %v1772
    %v1774 = vpop.f32.mrb[0].mxu0
    %1775 = vdwg.mxu0
    %v1776 = vmax.f32 %v1618, 0.0
    %v1777 = vmax.f32 %v1623, 0.0
    %v1778 = vmax.f32 %v1628, 0.0
    %v1779 = vmax.f32 %v1633, 0.0
    %v1780 = vmax.f32 %v1638, 0.0
    %v1781 = vmax.f32 %v1643, 0.0
    %v1782 = vmax.f32 %v1648, 0.0
    %v1783 = vmax.f32 %v1653, 0.0
    %v1784 = vmax.f32 %v1658, 0.0
    %v1785 = vmax.f32 %v1663, 0.0
    %v1786 = vmax.f32 %v1668, 0.0
    %v1787 = vmax.f32 %v1673, 0.0
    %v1788 = vmax.f32 %v1678, 0.0
    %v1789 = vmax.f32 %v1683, 0.0
    %v1790 = vmax.f32 %v1688, 0.0
    %v1791 = vmax.f32 %v1693, 0.0
    %v1792 = vmax.f32 %v1698, 0.0
    %v1793 = vmax.f32 %v1703, 0.0
    %v1794 = vmax.f32 %v1708, 0.0
    %v1795 = vmax.f32 %v1713, 0.0
    %v1796 = vmax.f32 %v1718, 0.0
    %v1797 = vmax.f32 %v1723, 0.0
    %v1798 = vmax.f32 %v1728, 0.0
    %v1799 = vmax.f32 %v1733, 0.0
    %v1800 = vmax.f32 %v1738, 0.0
    %v1801 = vmax.f32 %v1743, 0.0
    %v1802 = vmax.f32 %v1748, 0.0
    %v1803 = vmax.f32 %v1753, 0.0
    %v1804 = vmax.f32 %v1758, 0.0
    %v1805 = vmax.f32 %v1763, 0.0
    %v1806 = vmax.f32 %v1768, 0.0
    %v1807 = vmax.f32 %v1773, 0.0
    %v1808 = vld [vmem:[#allocation2 + $0x168] sm:$0xff]
    %v1809 = vld [vmem:[#allocation2 + $0x170] sm:$0x3]
    %v1810 = vld [vmem:[#allocation2 + $0x178] sm:$0x1]
    %v1811 = vlaneseq
    %v1812 = vshrl.u32 %v1811, 7
    %v1813 = vsub.s32 0, %v1812
    %v1814 = vrot.slane %v1810, %v1813
    %vm1815 = vcmask 80896
    %v1817 = vsel %vm1815, %v1776, 0
    %v1820 = vsel %vm1815, %v1777, 0
    %v1823 = vsel %vm1815, %v1778, 0
    %v1826 = vsel %vm1815, %v1779, 0
    %v1829 = vsel %vm1815, %v1780, 0
    %v1832 = vsel %vm1815, %v1781, 0
    %v1835 = vsel %vm1815, %v1782, 0
    %v1838 = vsel %vm1815, %v1783, 0
    %v1841 = vsel %vm1815, %v1784, 0
    %v1844 = vsel %vm1815, %v1785, 0
    %v1847 = vsel %vm1815, %v1786, 0
    %v1850 = vsel %vm1815, %v1787, 0
    %v1853 = vsel %vm1815, %v1788, 0
    %v1856 = vsel %vm1815, %v1789, 0
    %v1859 = vsel %vm1815, %v1790, 0
    %v1862 = vsel %vm1815, %v1791, 0
    %v1865 = vsel %vm1815, %v1792, 0
    %v1868 = vsel %vm1815, %v1793, 0
    %v1871 = vsel %vm1815, %v1794, 0
    %v1874 = vsel %vm1815, %v1795, 0
    %v1877 = vsel %vm1815, %v1796, 0
    %v1880 = vsel %vm1815, %v1797, 0
    %v1883 = vsel %vm1815, %v1798, 0
    %v1886 = vsel %vm1815, %v1799, 0
    %v1889 = vsel %vm1815, %v1800, 0
    %v1892 = vsel %vm1815, %v1801, 0
    %v1895 = vsel %vm1815, %v1802, 0
    %v1898 = vsel %vm1815, %v1803, 0
    %v1901 = vsel %vm1815, %v1804, 0
    %v1904 = vsel %vm1815, %v1805, 0
    %v1907 = vsel %vm1815, %v1806, 0
    %v1910 = vsel %vm1815, %v1807, 0
    %v1913 = vsel %vm1547, %v1809, 0
    %1915 = vmatprep.subr.mxu0 0.0
    %1916 = vmatpush1.msra.mxu0 %v1808
    %1917 = vmatprep.subr.mxu0 0.0
    %1918 = vmatpush1.msra.mxu0 %v1913
    %1919 = vmatprep.subr.mxu0 0.0
    %1920 = vmatpush1.msra.mxu0 0.0
    %1921 = vmatprep.subr.mxu0 0.0
    %1922 = vmatpush1.msra.mxu0 0.0
    %1923 = vmatprep.subr.mxu0 0.0
    %1924 = vmatpush1.msra.mxu0 0.0
    %1925 = vmatprep.subr.mxu0 0.0
    %1926 = vmatpush1.msra.mxu0 0.0
    %1927 = vmatprep.subr.mxu0 0.0
    %1928 = vmatpush1.msra.mxu0 0.0
    %1929 = vmatprep.subr.mxu0 0.0
    %1930 = vmatpush1.msra.mxu0 0.0
    %1931 = vmatprep.subr.mxu0 0.0
    %1932 = vmatpush1.msra.mxu0 0.0
    %1933 = vmatprep.subr.mxu0 0.0
    %1934 = vmatpush1.msra.mxu0 0.0
    %1935 = vmatprep.subr.mxu0 0.0
    %1936 = vmatpush1.msra.mxu0 0.0
    %1937 = vmatprep.subr.mxu0 0.0
    %1938 = vmatpush1.msra.mxu0 0.0
    %1939 = vmatprep.subr.mxu0 0.0
    %1940 = vmatpush1.msra.mxu0 0.0
    %1941 = vmatprep.subr.mxu0 0.0
    %1942 = vmatpush1.msra.mxu0 0.0
    %1943 = vmatprep.subr.mxu0 0.0
    %1944 = vmatpush1.msra.mxu0 0.0
    %1945 = vmatprep.subr.mxu0 0.0
    %1946 = vmatpush1.msra.mxu0 0.0
    %1947 = vmatprep.subr.mxu0 0.0
    %1948 = vmatpush1.msra.mxu0 0.0
    %1949 = vmatprep.subr.mxu0 0.0
    %1950 = vmatpush1.msra.mxu0 0.0
    %1951 = vmatprep.subr.mxu0 0.0
    %1952 = vmatpush1.msra.mxu0 0.0
    %1953 = vmatprep.subr.mxu0 0.0
    %1954 = vmatpush1.msra.mxu0 0.0
    %1955 = vmatprep.subr.mxu0 0.0
    %1956 = vmatpush1.msra.mxu0 0.0
    %1957 = vmatprep.subr.mxu0 0.0
    %1958 = vmatpush1.msra.mxu0 0.0
    %1959 = vmatprep.subr.mxu0 0.0
    %1960 = vmatpush1.msra.mxu0 0.0
    %1961 = vmatprep.subr.mxu0 0.0
    %1962 = vmatpush1.msra.mxu0 0.0
    %1963 = vmatprep.subr.mxu0 0.0
    %1964 = vmatpush1.msra.mxu0 0.0
    %1965 = vmatprep.subr.mxu0 0.0
    %1966 = vmatpush1.msra.mxu0 0.0
    %1967 = vmatprep.subr.mxu0 0.0
    %1968 = vmatpush1.msra.mxu0 0.0
    %1969 = vmatprep.subr.mxu0 0.0
    %1970 = vmatpush1.msra.mxu0 0.0
    %1971 = vmatprep.subr.mxu0 0.0
    %1972 = vmatpush1.msra.mxu0 0.0
    %1973 = vmatprep.subr.mxu0 0.0
    %1974 = vmatpush1.msra.mxu0 0.0
    %1975 = vmatprep.subr.mxu0 0.0
    %1976 = vmatpush1.msra.mxu0 0.0
    %1977 = vmatprep.subr.mxu0 0.0
    %1978 = vmatpush1.msra.mxu0 0.0
    %1979 = vmatprep.mubr.f32.mxu0 0.0
    %1980 = vmatmul.mubr.f32.gmra.mrb[0].mxu0 %v1817
    %v1981 = vpop.f32.mrb[0].mxu0
    %v1982 = vadd.f32 %v1814, %v1981
    %v1983 = vpop.f32.mrb[0].mxu0
    %1984 = vmatprep.mubr.f32.mxu0 0.0
    %1985 = vmatmul.mubr.f32.gmra.mrb[0].mxu0 %v1820
    %v1986 = vpop.f32.mrb[0].mxu0
    %v1987 = vadd.f32 %v1814, %v1986
    %v1988 = vpop.f32.mrb[0].mxu0
    %1989 = vmatprep.mubr.f32.mxu0 0.0
    %1990 = vmatmul.mubr.f32.gmra.mrb[0].mxu0 %v1823
    %v1991 = vpop.f32.mrb[0].mxu0
    %v1992 = vadd.f32 %v1814, %v1991
    %v1993 = vpop.f32.mrb[0].mxu0
    %1994 = vmatprep.mubr.f32.mxu0 0.0
    %1995 = vmatmul.mubr.f32.gmra.mrb[0].mxu0 %v1826
    %v1996 = vpop.f32.mrb[0].mxu0
    %v1997 = vadd.f32 %v1814, %v1996
    %v1998 = vpop.f32.mrb[0].mxu0
    %1999 = vmatprep.mubr.f32.mxu0 0.0
    %2000 = vmatmul.mubr.f32.gmra.mrb[0].mxu0 %v1829
    %v2001 = vpop.f32.mrb[0].mxu0
    %v2002 = vadd.f32 %v1814, %v2001
    %v2003 = vpop.f32.mrb[0].mxu0
    %2004 = vmatprep.mubr.f32.mxu0 0.0
    %2005 = vmatmul.mubr.f32.gmra.mrb[0].mxu0 %v1832
    %v2006 = vpop.f32.mrb[0].mxu0
    %v2007 = vadd.f32 %v1814, %v2006
    %v2008 = vpop.f32.mrb[0].mxu0
    %2009 = vmatprep.mubr.f32.mxu0 0.0
    %2010 = vmatmul.mubr.f32.gmra.mrb[0].mxu0 %v1835
    %v2011 = vpop.f32.mrb[0].mxu0
    %v2012 = vadd.f32 %v1814, %v2011
    %v2013 = vpop.f32.mrb[0].mxu0
    %2014 = vmatprep.mubr.f32.mxu0 0.0
    %2015 = vmatmul.mubr.f32.gmra.mrb[0].mxu0 %v1838
    %v2016 = vpop.f32.mrb[0].mxu0
    %v2017 = vadd.f32 %v1814, %v2016
    %v2018 = vpop.f32.mrb[0].mxu0
    %2019 = vmatprep.mubr.f32.mxu0 0.0
    %2020 = vmatmul.mubr.f32.gmra.mrb[0].mxu0 %v1841
    %v2021 = vpop.f32.mrb[0].mxu0
    %v2022 = vadd.f32 %v1814, %v2021
    %v2023 = vpop.f32.mrb[0].mxu0
    %2024 = vmatprep.mubr.f32.mxu0 0.0
    %2025 = vmatmul.mubr.f32.gmra.mrb[0].mxu0 %v1844
    %v2026 = vpop.f32.mrb[0].mxu0
    %v2027 = vadd.f32 %v1814, %v2026
    %v2028 = vpop.f32.mrb[0].mxu0
    %2029 = vmatprep.mubr.f32.mxu0 0.0
    %2030 = vmatmul.mubr.f32.gmra.mrb[0].mxu0 %v1847
    %v2031 = vpop.f32.mrb[0].mxu0
    %v2032 = vadd.f32 %v1814, %v2031
    %v2033 = vpop.f32.mrb[0].mxu0
    %2034 = vmatprep.mubr.f32.mxu0 0.0
    %2035 = vmatmul.mubr.f32.gmra.mrb[0].mxu0 %v1850
    %v2036 = vpop.f32.mrb[0].mxu0
    %v2037 = vadd.f32 %v1814, %v2036
    %v2038 = vpop.f32.mrb[0].mxu0
    %2039 = vmatprep.mubr.f32.mxu0 0.0
    %2040 = vmatmul.mubr.f32.gmra.mrb[0].mxu0 %v1853
    %v2041 = vpop.f32.mrb[0].mxu0
    %v2042 = vadd.f32 %v1814, %v2041
    %v2043 = vpop.f32.mrb[0].mxu0
    %2044 = vmatprep.mubr.f32.mxu0 0.0
    %2045 = vmatmul.mubr.f32.gmra.mrb[0].mxu0 %v1856
    %v2046 = vpop.f32.mrb[0].mxu0
    %v2047 = vadd.f32 %v1814, %v2046
    %v2048 = vpop.f32.mrb[0].mxu0
    %2049 = vmatprep.mubr.f32.mxu0 0.0
    %2050 = vmatmul.mubr.f32.gmra.mrb[0].mxu0 %v1859
    %v2051 = vpop.f32.mrb[0].mxu0
    %v2052 = vadd.f32 %v1814, %v2051
    %v2053 = vpop.f32.mrb[0].mxu0
    %2054 = vmatprep.mubr.f32.mxu0 0.0
    %2055 = vmatmul.mubr.f32.gmra.mrb[0].mxu0 %v1862
    %v2056 = vpop.f32.mrb[0].mxu0
    %v2057 = vadd.f32 %v1814, %v2056
    %v2058 = vpop.f32.mrb[0].mxu0
    %2059 = vmatprep.mubr.f32.mxu0 0.0
    %2060 = vmatmul.mubr.f32.gmra.mrb[0].mxu0 %v1865
    %v2061 = vpop.f32.mrb[0].mxu0
    %v2062 = vadd.f32 %v1814, %v2061
    %v2063 = vpop.f32.mrb[0].mxu0
    %2064 = vmatprep.mubr.f32.mxu0 0.0
    %2065 = vmatmul.mubr.f32.gmra.mrb[0].mxu0 %v1868
    %v2066 = vpop.f32.mrb[0].mxu0
    %v2067 = vadd.f32 %v1814, %v2066
    %v2068 = vpop.f32.mrb[0].mxu0
    %2069 = vmatprep.mubr.f32.mxu0 0.0
    %2070 = vmatmul.mubr.f32.gmra.mrb[0].mxu0 %v1871
    %v2071 = vpop.f32.mrb[0].mxu0
    %v2072 = vadd.f32 %v1814, %v2071
    %v2073 = vpop.f32.mrb[0].mxu0
    %2074 = vmatprep.mubr.f32.mxu0 0.0
    %2075 = vmatmul.mubr.f32.gmra.mrb[0].mxu0 %v1874
    %v2076 = vpop.f32.mrb[0].mxu0
    %v2077 = vadd.f32 %v1814, %v2076
    %v2078 = vpop.f32.mrb[0].mxu0
    %2079 = vmatprep.mubr.f32.mxu0 0.0
    %2080 = vmatmul.mubr.f32.gmra.mrb[0].mxu0 %v1877
    %v2081 = vpop.f32.mrb[0].mxu0
    %v2082 = vadd.f32 %v1814, %v2081
    %v2083 = vpop.f32.mrb[0].mxu0
    %2084 = vmatprep.mubr.f32.mxu0 0.0
    %2085 = vmatmul.mubr.f32.gmra.mrb[0].mxu0 %v1880
    %v2086 = vpop.f32.mrb[0].mxu0
    %v2087 = vadd.f32 %v1814, %v2086
    %v2088 = vpop.f32.mrb[0].mxu0
    %2089 = vmatprep.mubr.f32.mxu0 0.0
    %2090 = vmatmul.mubr.f32.gmra.mrb[0].mxu0 %v1883
    %v2091 = vpop.f32.mrb[0].mxu0
    %v2092 = vadd.f32 %v1814, %v2091
    %v2093 = vpop.f32.mrb[0].mxu0
    %2094 = vmatprep.mubr.f32.mxu0 0.0
    %2095 = vmatmul.mubr.f32.gmra.mrb[0].mxu0 %v1886
    %v2096 = vpop.f32.mrb[0].mxu0
    %v2097 = vadd.f32 %v1814, %v2096
    %v2098 = vpop.f32.mrb[0].mxu0
    %2099 = vmatprep.mubr.f32.mxu0 0.0
    %2100 = vmatmul.mubr.f32.gmra.mrb[0].mxu0 %v1889
    %v2101 = vpop.f32.mrb[0].mxu0
    %v2102 = vadd.f32 %v1814, %v2101
    %v2103 = vpop.f32.mrb[0].mxu0
    %2104 = vmatprep.mubr.f32.mxu0 0.0
    %2105 = vmatmul.mubr.f32.gmra.mrb[0].mxu0 %v1892
    %v2106 = vpop.f32.mrb[0].mxu0
    %v2107 = vadd.f32 %v1814, %v2106
    %v2108 = vpop.f32.mrb[0].mxu0
    %2109 = vmatprep.mubr.f32.mxu0 0.0
    %2110 = vmatmul.mubr.f32.gmra.mrb[0].mxu0 %v1895
    %v2111 = vpop.f32.mrb[0].mxu0
    %v2112 = vadd.f32 %v1814, %v2111
    %v2113 = vpop.f32.mrb[0].mxu0
    %2114 = vmatprep.mubr.f32.mxu0 0.0
    %2115 = vmatmul.mubr.f32.gmra.mrb[0].mxu0 %v1898
    %v2116 = vpop.f32.mrb[0].mxu0
    %v2117 = vadd.f32 %v1814, %v2116
    %v2118 = vpop.f32.mrb[0].mxu0
    %2119 = vmatprep.mubr.f32.mxu0 0.0
    %2120 = vmatmul.mubr.f32.gmra.mrb[0].mxu0 %v1901
    %v2121 = vpop.f32.mrb[0].mxu0
    %v2122 = vadd.f32 %v1814, %v2121
    %v2123 = vpop.f32.mrb[0].mxu0
    %2124 = vmatprep.mubr.f32.mxu0 0.0
    %2125 = vmatmul.mubr.f32.gmra.mrb[0].mxu0 %v1904
    %v2126 = vpop.f32.mrb[0].mxu0
    %v2127 = vadd.f32 %v1814, %v2126
    %v2128 = vpop.f32.mrb[0].mxu0
    %2129 = vmatprep.mubr.f32.mxu0 0.0
    %2130 = vmatmul.mubr.f32.gmra.mrb[0].mxu0 %v1907
    %v2131 = vpop.f32.mrb[0].mxu0
    %v2132 = vadd.f32 %v1814, %v2131
    %v2133 = vpop.f32.mrb[0].mxu0
    %2134 = vmatprep.mubr.f32.mxu0 0.0
    %2135 = vmatmul.mubr.f32.gmra.mrb[0].mxu0 %v1910
    %v2136 = vpop.f32.mrb[0].mxu0
    %v2137 = vadd.f32 %v1814, %v2136
    %v2138 = vpop.f32.mrb[0].mxu0
    %2139 = vdwg.mxu0
    %2140 = vst [vmem:[#allocation5] sm:$0xff] %v1982
    %2141 = vst [vmem:[#allocation5 + $0x8] sm:$0xff] %v1987
    %2142 = vst [vmem:[#allocation5 + $0x10] sm:$0xff] %v1992
    %2143 = vst [vmem:[#allocation5 + $0x18] sm:$0xff] %v1997
    %2144 = vst [vmem:[#allocation5 + $0x20] sm:$0xff] %v2002
    %2145 = vst [vmem:[#allocation5 + $0x28] sm:$0xff] %v2007
    %2146 = vst [vmem:[#allocation5 + $0x30] sm:$0xff] %v2012
    %2147 = vst [vmem:[#allocation5 + $0x38] sm:$0xff] %v2017
    %2148 = vst [vmem:[#allocation5 + $0x40] sm:$0xff] %v2022
    %2149 = vst [vmem:[#allocation5 + $0x48] sm:$0xff] %v2027
    %2150 = vst [vmem:[#allocation5 + $0x50] sm:$0xff] %v2032
    %2151 = vst [vmem:[#allocation5 + $0x58] sm:$0xff] %v2037
    %2152 = vst [vmem:[#allocation5 + $0x60] sm:$0xff] %v2042
    %2153 = vst [vmem:[#allocation5 + $0x68] sm:$0xff] %v2047
    %2154 = vst [vmem:[#allocation5 + $0x70] sm:$0xff] %v2052
    %2155 = vst [vmem:[#allocation5 + $0x78] sm:$0xff] %v2057
    %2156 = vst [vmem:[#allocation5 + $0x80] sm:$0xff] %v2062
    %2157 = vst [vmem:[#allocation5 + $0x88] sm:$0xff] %v2067
    %2158 = vst [vmem:[#allocation5 + $0x90] sm:$0xff] %v2072
    %2159 = vst [vmem:[#allocation5 + $0x98] sm:$0xff] %v2077
    %2160 = vst [vmem:[#allocation5 + $0xa0] sm:$0xff] %v2082
    %2161 = vst [vmem:[#allocation5 + $0xa8] sm:$0xff] %v2087
    %2162 = vst [vmem:[#allocation5 + $0xb0] sm:$0xff] %v2092
    %2163 = vst [vmem:[#allocation5 + $0xb8] sm:$0xff] %v2097
    %2164 = vst [vmem:[#allocation5 + $0xc0] sm:$0xff] %v2102
    %2165 = vst [vmem:[#allocation5 + $0xc8] sm:$0xff] %v2107
    %2166 = vst [vmem:[#allocation5 + $0xd0] sm:$0xff] %v2112
    %2167 = vst [vmem:[#allocation5 + $0xd8] sm:$0xff] %v2117
    %2168 = vst [vmem:[#allocation5 + $0xe0] sm:$0xff] %v2122
    %2169 = vst [vmem:[#allocation5 + $0xe8] sm:$0xff] %v2127
    %2170 = vst [vmem:[#allocation5 + $0xf0] sm:$0xff] %v2132
    %2171 = vst [vmem:[#allocation5 + $0xf8] sm:$0xff] %v2137
    // Predicated region
    $region14: #{tpu_custom_call.1} parent=1 // pred_check
      _
    $region15: #{tpu_custom_call.1} parent=1 // pred_check_branch
      %2173 = sbr.rel (0) target = $region17
    $region16: #{tpu_custom_call.1} parent=1 // pred_region
      %s2175 = ssub.s32 4096, 4096
      %2176 = vsyncadd [#allocation4], %s2175
      %s2177 = sshll.u32 [#allocation5], 4
      %s2178 = int_to_ptr.vmem [resolvable:$true] %s2177
      %2183 = dma.vmem_to_hbm [thread:$0]  %s2178, 4096, %s2, [#allocation4], 128, 128, 8
    $region17: #{tpu_custom_call.1} parent=1 // pred_fallthru
      _
    // Predicated region
    $region18: #{tpu_custom_call.1} parent=1 // pred_check
      _
    $region19: #{tpu_custom_call.1} parent=1 // pred_check_branch
      %2185 = sbr.rel (0) target = $region21
    $region20: #{tpu_custom_call.1} parent=1 // pred_region
      %2186 = dma.done [#allocation4], 4096
    $region21: #{tpu_custom_call.1} parent=1 // pred_fallthru
      _
    %2187 = vsyncpa [#allocation3], 1
    %2188 = vsyncpa [#allocation4], 1

</llo_original>
